<compile_context>
chip_gen: v7x
topology: tpu7x:2x2x1
jax: 0.10.0
libtpu: 0.0.40
codegen_flags: <defaults>
</compile_context>

<pallas_src>
import functools

import jax
import jax.numpy as jnp
from jax.experimental import pallas as pl
from jax.experimental.pallas import tpu as pltpu

HIDDEN = [256, 256, 256]           # hidden_layers_size in the reference module
LANE = 128


def _round_up(n, m):
    return ((n + m - 1) // m) * m


# ----------------------------------------------------------------------------
# Fused kernel: CNN stand-in -> [:,1] -> min/max normalize -> MLPNet.
# ----------------------------------------------------------------------------
def mlp_cnn_kernel(patches_ref, pool_ref, x_ref,
                   wc_ref, bc_ref, wh_ref, bh_ref,
                   w1a_ref, w1b_ref, b1_ref,
                   w2_ref, b2_ref,
                   w3_ref, b3_ref,
                   w4_ref, b4_ref,
                   out_ref):
    # --- CNN stand-in: one lane-dense 2-D MXU matmul (M=B*HW, K=C*9, N=128) ---
    conv = jnp.dot(patches_ref[...], wc_ref[...],
                   preferred_element_type=jnp.float32)             # (B*HW, 128)
    conv = jnp.maximum(conv + bc_ref[...], 0.0)                    # bias + ReLU

    # Global average pool as an MXU matmul: (B, B*HW) @ (B*HW, 128).
    pooled = jnp.dot(pool_ref[...], conv,
                     preferred_element_type=jnp.float32)           # (B, 128)
    logits = (jnp.dot(pooled, wh_ref[...],
                      preferred_element_type=jnp.float32)
              + bh_ref[...])                                       # (B, 2)

    # outputs_cnn = cnn(images)[:, 1].reshape(B, 1); normalize by global min/max.
    c = logits[:, 1:2]                                             # (B, 1)
    cmax = jnp.max(c, keepdims=True)                               # (1, 1)
    cmin = jnp.min(c, keepdims=True)                               # (1, 1)
    span = cmax - cmin
    safe_span = jnp.where(span == 0.0, jnp.float32(1.0), span)     # NaN guard
    c_norm = (c - cmin) * pl.reciprocal(safe_span, approx=True)    # EUP recip

    # --- MLPNet: concat expressed as split first-layer weight ---
    # layer 0: Linear(num_inputs + 1 -> 256) + ReLU (+ Dropout == identity)
    h = jnp.dot(x_ref[...], w1a_ref[...], preferred_element_type=jnp.float32)
    h = jnp.maximum(h + c_norm * w1b_ref[...] + b1_ref[...], 0.0)
    # layer 1: Linear(256 -> 256) + ReLU
    h = jnp.maximum(
        jnp.dot(h, w2_ref[...], preferred_element_type=jnp.float32) + b2_ref[...], 0.0)
    # layer 2: Linear(256 -> 256) + ReLU
    h = jnp.maximum(
        jnp.dot(h, w3_ref[...], preferred_element_type=jnp.float32) + b3_ref[...], 0.0)
    # layer 3: Linear(256 -> num_outputs), lane-padded to 128 (zero columns).
    out_ref[...] = (
        jnp.dot(h, w4_ref[...], preferred_element_type=jnp.float32) + b4_ref[...]
    )


# ----------------------------------------------------------------------------
# Glue: im2col (pure data rearrangement), param init, pallas_call wrapper.
# ----------------------------------------------------------------------------
def im2col(images, k=3, pad=1):
    """NCHW images -> (B*H*W, C*k*k) patches, stride 1, 'same' padding."""
    B, C, H, W = images.shape
    xp = jnp.pad(images, ((0, 0), (0, 0), (pad, pad), (pad, pad)))
    cols = [xp[:, :, dy:dy + H, dx:dx + W] for dy in range(k) for dx in range(k)]
    p = jnp.stack(cols, axis=2)                                    # (B, C, k*k, H, W)
    p = p.transpose(0, 3, 4, 1, 2)                                 # (B, H, W, C, k*k)
    return p.reshape(B * H * W, C * k * k)


def init_params(key, num_inputs, num_outputs, c_in, c_conv, n_classes=2, k=3):
    keys = jax.random.split(key, 12)
    u = lambda kk, shape, fan_in: jax.random.uniform(
        kk, shape, jnp.float32, -1.0 / jnp.sqrt(fan_in), 1.0 / jnp.sqrt(fan_in))

    co_pad = _round_up(c_conv, LANE)
    out_pad = _round_up(num_outputs, LANE)

    params = {}
    # conv weight in PyTorch layout (Co, Ci, kh, kw) -> (Ci*k*k, Co), zero-padded
    # to 128 output lanes (padded lanes stay exactly zero through ReLU/pool/head).
    wc = u(keys[0], (c_conv, c_in, k, k), c_in * k * k)
    wc = wc.transpose(1, 2, 3, 0).reshape(c_in * k * k, c_conv)
    params["wc"] = jnp.pad(wc, ((0, 0), (0, co_pad - c_conv)))
    bc = u(keys[1], (1, c_conv), c_in * k * k)
    params["bc"] = jnp.pad(bc, ((0, 0), (0, co_pad - c_conv)))
    wh = u(keys[2], (c_conv, n_classes), c_conv)
    params["wh"] = jnp.pad(wh, ((0, co_pad - c_conv), (0, 0)))
    params["bh"] = u(keys[3], (1, n_classes), c_conv)

    sizes = [num_inputs + 1] + HIDDEN + [num_outputs]
    w1 = u(keys[4], (sizes[0], sizes[1]), sizes[0])
    params["w1a"], params["w1b"] = w1[:num_inputs, :], w1[num_inputs:, :]
    params["b1"] = u(keys[5], (1, sizes[1]), sizes[0])
    params["w2"] = u(keys[6], (sizes[1], sizes[2]), sizes[1])
    params["b2"] = u(keys[7], (1, sizes[2]), sizes[1])
    params["w3"] = u(keys[8], (sizes[2], sizes[3]), sizes[2])
    params["b3"] = u(keys[9], (1, sizes[3]), sizes[2])
    # final layer zero-padded to a lane-dense 128-wide output.
    w4 = u(keys[10], (sizes[3], sizes[4]), sizes[3])
    params["w4"] = jnp.pad(w4, ((0, 0), (0, out_pad - num_outputs)))
    b4 = u(keys[11], (1, sizes[4]), sizes[3])
    params["b4"] = jnp.pad(b4, ((0, 0), (0, out_pad - num_outputs)))
    return params


@functools.partial(jax.jit, static_argnames=("num_outputs",))
def mlp_cnn_forward(params, inputs, images, num_outputs):
    B = inputs.shape[0]
    _, _, H, W = images.shape
    HW = H * W

    patches = im2col(images)                                       # (B*HW, C*9)
    # Block-averaging matrix so the global-avg-pool is an MXU matmul in-kernel.
    pool_mat = jnp.kron(jnp.eye(B, dtype=jnp.float32),
                        jnp.full((1, HW), 1.0 / HW, jnp.float32))  # (B, B*HW)

    out_pad = params["w4"].shape[1]
    operands = (patches, pool_mat, inputs,
                params["wc"], params["bc"], params["wh"], params["bh"],
                params["w1a"], params["w1b"], params["b1"],
                params["w2"], params["b2"],
                params["w3"], params["b3"],
                params["w4"], params["b4"])

    out_full = pl.pallas_call(
        mlp_cnn_kernel,
        out_shape=jax.ShapeDtypeStruct((B, out_pad), jnp.float32),
        in_specs=[pl.BlockSpec(memory_space=pltpu.MemorySpace.VMEM)] * len(operands),
        out_specs=pl.BlockSpec(memory_space=pltpu.MemorySpace.VMEM),
    )(*operands)
    # un-pad the lane-dense output (padded weight columns are exactly zero).
    return out_full[:, :num_outputs]


if __name__ == "__main__":
    # Small shapes consistent with the module:
    B, C, H, W = 2, 4, 16, 16          # images (NCHW)
    NUM_INPUTS = 8                     # number of 'input_*' columns
    NUM_OUTPUTS = 4                    # MLP+CNN output size
    C_CONV = 8                         # stand-in conv channels

    key = jax.random.PRNGKey(0)
    k_in, k_img, k_params = jax.random.split(key, 3)
    inputs = jax.random.normal(k_in, (B, NUM_INPUTS), jnp.float32)
    images = jax.random.normal(k_img, (B, C, H, W), jnp.float32)
    params = init_params(k_params, NUM_INPUTS, NUM_OUTPUTS, C, C_CONV)

    out = mlp_cnn_forward(params, inputs, images, NUM_OUTPUTS)
    jax.block_until_ready(out)
    assert out.shape == (B, NUM_OUTPUTS), out.shape
    print("KERNEL_OK")
</pallas_src>

<mosaic_0001>
module attributes {stable_mosaic.version = 11 : i64} {
  func.func @mlp_cnn_kernel(%arg0: memref<512x36xf32, #tpu.memory_space<vmem>>, %arg1: memref<2x512xf32, #tpu.memory_space<vmem>>, %arg2: memref<2x8xf32, #tpu.memory_space<vmem>>, %arg3: memref<36x128xf32, #tpu.memory_space<vmem>>, %arg4: memref<1x128xf32, #tpu.memory_space<vmem>>, %arg5: memref<128x2xf32, #tpu.memory_space<vmem>>, %arg6: memref<1x2xf32, #tpu.memory_space<vmem>>, %arg7: memref<8x256xf32, #tpu.memory_space<vmem>>, %arg8: memref<1x256xf32, #tpu.memory_space<vmem>>, %arg9: memref<1x256xf32, #tpu.memory_space<vmem>>, %arg10: memref<256x256xf32, #tpu.memory_space<vmem>>, %arg11: memref<1x256xf32, #tpu.memory_space<vmem>>, %arg12: memref<256x256xf32, #tpu.memory_space<vmem>>, %arg13: memref<1x256xf32, #tpu.memory_space<vmem>>, %arg14: memref<256x128xf32, #tpu.memory_space<vmem>>, %arg15: memref<1x128xf32, #tpu.memory_space<vmem>>, %arg16: memref<2x128xf32, #tpu.memory_space<vmem>>) attributes {dimension_semantics = [], scalar_prefetch = 0 : i64, scratch_operands = 0 : i64, tpu.core_type = #tpu.core_type<tc>} {
    %c0 = arith.constant 0 : index
    %c0_0 = arith.constant 0 : index
    %0 = vector.load %arg0[%c0, %c0_0] : memref<512x36xf32, #tpu.memory_space<vmem>>, vector<512x36xf32>
    %c0_1 = arith.constant 0 : index
    %c0_2 = arith.constant 0 : index
    %1 = vector.load %arg3[%c0_1, %c0_2] : memref<36x128xf32, #tpu.memory_space<vmem>>, vector<36x128xf32>
    %cst = arith.constant dense<0.000000e+00> : vector<512x128xf32>
    %2 = tpu.matmul %0, %1, %cst {dimension_numbers = #tpu.dot_dimension_numbers<[1], [0], [0], [1], [0, 0, 1, 1], [], []>} : vector<512x36xf32>, vector<36x128xf32>, vector<512x128xf32> -> vector<512x128xf32>
    %c0_3 = arith.constant 0 : index
    %c0_4 = arith.constant 0 : index
    %3 = vector.load %arg4[%c0_3, %c0_4] : memref<1x128xf32, #tpu.memory_space<vmem>>, vector<1x128xf32>
    %4 = vector.broadcast %3 : vector<1x128xf32> to vector<512x128xf32>
    %5 = arith.addf %2, %4 : vector<512x128xf32>
    %cst_5 = arith.constant 0.000000e+00 : f32
    %6 = vector.broadcast %cst_5 : f32 to vector<512x128xf32>
    %7 = arith.maximumf %5, %6 : vector<512x128xf32>
    %c0_6 = arith.constant 0 : index
    %c0_7 = arith.constant 0 : index
    %8 = vector.load %arg1[%c0_6, %c0_7] : memref<2x512xf32, #tpu.memory_space<vmem>>, vector<2x512xf32>
    %cst_8 = arith.constant dense<0.000000e+00> : vector<2x128xf32>
    %9 = tpu.matmul %8, %7, %cst_8 {dimension_numbers = #tpu.dot_dimension_numbers<[1], [0], [0], [1], [0, 0, 1, 1], [], []>} : vector<2x512xf32>, vector<512x128xf32>, vector<2x128xf32> -> vector<2x128xf32>
    %c0_9 = arith.constant 0 : index
    %c0_10 = arith.constant 0 : index
    %10 = vector.load %arg5[%c0_9, %c0_10] : memref<128x2xf32, #tpu.memory_space<vmem>>, vector<128x2xf32>
    %cst_11 = arith.constant dense<0.000000e+00> : vector<2x2xf32>
    %11 = tpu.matmul %9, %10, %cst_11 {dimension_numbers = #tpu.dot_dimension_numbers<[1], [0], [0], [1], [0, 0, 1, 1], [], []>} : vector<2x128xf32>, vector<128x2xf32>, vector<2x2xf32> -> vector<2x2xf32>
    %c0_12 = arith.constant 0 : index
    %c0_13 = arith.constant 0 : index
    %12 = vector.load %arg6[%c0_12, %c0_13] : memref<1x2xf32, #tpu.memory_space<vmem>>, vector<1x2xf32>
    %13 = vector.broadcast %12 : vector<1x2xf32> to vector<2x2xf32>
    %14 = arith.addf %11, %13 : vector<2x2xf32>
    %15 = vector.extract_strided_slice %14 {offsets = [0, 1], sizes = [2, 1], strides = [1, 1]} : vector<2x2xf32> to vector<2x1xf32>
    %16 = vector.shape_cast %15 : vector<2x1xf32> to vector<1x2x1xf32>
    %cst_14 = arith.constant dense<0xFF800000> : vector<1xf32>
    %17 = vector.multi_reduction <maximumf>, %16, %cst_14 [1, 2] : vector<1x2x1xf32> to vector<1xf32>
    %18 = vector.shape_cast %17 : vector<1xf32> to vector<1x1x1xf32>
    %19 = vector.extract %18[0, 0, 0] : f32 from vector<1x1x1xf32>
    %20 = vector.broadcast %19 : f32 to vector<1x1xf32>
    %21 = vector.shape_cast %15 : vector<2x1xf32> to vector<1x2x1xf32>
    %cst_15 = arith.constant dense<0x7F800000> : vector<1xf32>
    %22 = vector.multi_reduction <minimumf>, %21, %cst_15 [1, 2] : vector<1x2x1xf32> to vector<1xf32>
    %23 = vector.shape_cast %22 : vector<1xf32> to vector<1x1x1xf32>
    %24 = vector.extract %23[0, 0, 0] : f32 from vector<1x1x1xf32>
    %25 = vector.broadcast %24 : f32 to vector<1x1xf32>
    %26 = arith.subf %20, %25 : vector<1x1xf32>
    %cst_16 = arith.constant 0.000000e+00 : f32
    %27 = vector.broadcast %cst_16 : f32 to vector<1x1xf32>
    %28 = arith.cmpf oeq, %26, %27 : vector<1x1xf32>
    %cst_17 = arith.constant 1.000000e+00 : f32
    %29 = vector.broadcast %cst_17 : f32 to vector<1x1xf32>
    %30 = arith.select %28, %29, %26 : vector<1x1xi1>, vector<1x1xf32>
    %31 = vector.broadcast %25 : vector<1x1xf32> to vector<2x1xf32>
    %32 = arith.subf %15, %31 : vector<2x1xf32>
    %33 = tpu.reciprocal %30 {approx = true} : vector<1x1xf32> -> vector<1x1xf32>
    %34 = vector.broadcast %33 : vector<1x1xf32> to vector<2x1xf32>
    %35 = arith.mulf %32, %34 : vector<2x1xf32>
    %c0_18 = arith.constant 0 : index
    %c0_19 = arith.constant 0 : index
    %36 = vector.load %arg2[%c0_18, %c0_19] : memref<2x8xf32, #tpu.memory_space<vmem>>, vector<2x8xf32>
    %c0_20 = arith.constant 0 : index
    %c0_21 = arith.constant 0 : index
    %37 = vector.load %arg7[%c0_20, %c0_21] : memref<8x256xf32, #tpu.memory_space<vmem>>, vector<8x256xf32>
    %cst_22 = arith.constant dense<0.000000e+00> : vector<2x256xf32>
    %38 = tpu.matmul %36, %37, %cst_22 {dimension_numbers = #tpu.dot_dimension_numbers<[1], [0], [0], [1], [0, 0, 1, 1], [], []>} : vector<2x8xf32>, vector<8x256xf32>, vector<2x256xf32> -> vector<2x256xf32>
    %c0_23 = arith.constant 0 : index
    %c0_24 = arith.constant 0 : index
    %39 = vector.load %arg8[%c0_23, %c0_24] : memref<1x256xf32, #tpu.memory_space<vmem>>, vector<1x256xf32>
    %40 = vector.broadcast %35 : vector<2x1xf32> to vector<2x256xf32>
    %41 = vector.broadcast %39 : vector<1x256xf32> to vector<2x256xf32>
    %42 = arith.mulf %40, %41 : vector<2x256xf32>
    %43 = arith.addf %38, %42 : vector<2x256xf32>
    %c0_25 = arith.constant 0 : index
    %c0_26 = arith.constant 0 : index
    %44 = vector.load %arg9[%c0_25, %c0_26] : memref<1x256xf32, #tpu.memory_space<vmem>>, vector<1x256xf32>
    %45 = vector.broadcast %44 : vector<1x256xf32> to vector<2x256xf32>
    %46 = arith.addf %43, %45 : vector<2x256xf32>
    %cst_27 = arith.constant 0.000000e+00 : f32
    %47 = vector.broadcast %cst_27 : f32 to vector<2x256xf32>
    %48 = arith.maximumf %46, %47 : vector<2x256xf32>
    %c0_28 = arith.constant 0 : index
    %c0_29 = arith.constant 0 : index
    %49 = vector.load %arg10[%c0_28, %c0_29] : memref<256x256xf32, #tpu.memory_space<vmem>>, vector<256x256xf32>
    %cst_30 = arith.constant dense<0.000000e+00> : vector<2x256xf32>
    %50 = tpu.matmul %48, %49, %cst_30 {dimension_numbers = #tpu.dot_dimension_numbers<[1], [0], [0], [1], [0, 0, 1, 1], [], []>} : vector<2x256xf32>, vector<256x256xf32>, vector<2x256xf32> -> vector<2x256xf32>
    %c0_31 = arith.constant 0 : index
    %c0_32 = arith.constant 0 : index
    %51 = vector.load %arg11[%c0_31, %c0_32] : memref<1x256xf32, #tpu.memory_space<vmem>>, vector<1x256xf32>
    %52 = vector.broadcast %51 : vector<1x256xf32> to vector<2x256xf32>
    %53 = arith.addf %50, %52 : vector<2x256xf32>
    %cst_33 = arith.constant 0.000000e+00 : f32
    %54 = vector.broadcast %cst_33 : f32 to vector<2x256xf32>
    %55 = arith.maximumf %53, %54 : vector<2x256xf32>
    %c0_34 = arith.constant 0 : index
    %c0_35 = arith.constant 0 : index
    %56 = vector.load %arg12[%c0_34, %c0_35] : memref<256x256xf32, #tpu.memory_space<vmem>>, vector<256x256xf32>
    %cst_36 = arith.constant dense<0.000000e+00> : vector<2x256xf32>
    %57 = tpu.matmul %55, %56, %cst_36 {dimension_numbers = #tpu.dot_dimension_numbers<[1], [0], [0], [1], [0, 0, 1, 1], [], []>} : vector<2x256xf32>, vector<256x256xf32>, vector<2x256xf32> -> vector<2x256xf32>
    %c0_37 = arith.constant 0 : index
    %c0_38 = arith.constant 0 : index
    %58 = vector.load %arg13[%c0_37, %c0_38] : memref<1x256xf32, #tpu.memory_space<vmem>>, vector<1x256xf32>
    %59 = vector.broadcast %58 : vector<1x256xf32> to vector<2x256xf32>
    %60 = arith.addf %57, %59 : vector<2x256xf32>
    %cst_39 = arith.constant 0.000000e+00 : f32
    %61 = vector.broadcast %cst_39 : f32 to vector<2x256xf32>
    %62 = arith.maximumf %60, %61 : vector<2x256xf32>
    %c0_40 = arith.constant 0 : index
    %c0_41 = arith.constant 0 : index
    %63 = vector.load %arg14[%c0_40, %c0_41] : memref<256x128xf32, #tpu.memory_space<vmem>>, vector<256x128xf32>
    %cst_42 = arith.constant dense<0.000000e+00> : vector<2x128xf32>
    %64 = tpu.matmul %62, %63, %cst_42 {dimension_numbers = #tpu.dot_dimension_numbers<[1], [0], [0], [1], [0, 0, 1, 1], [], []>} : vector<2x256xf32>, vector<256x128xf32>, vector<2x128xf32> -> vector<2x128xf32>
    %c0_43 = arith.constant 0 : index
    %c0_44 = arith.constant 0 : index
    %65 = vector.load %arg15[%c0_43, %c0_44] : memref<1x128xf32, #tpu.memory_space<vmem>>, vector<1x128xf32>
    %66 = vector.broadcast %65 : vector<1x128xf32> to vector<2x128xf32>
    %67 = arith.addf %64, %66 : vector<2x128xf32>
    %c0_45 = arith.constant 0 : index
    %c0_46 = arith.constant 0 : index
    %68 = vector.load %arg16[%c0_45, %c0_46] : memref<2x128xf32, #tpu.memory_space<vmem>>, vector<2x128xf32>
    tpu.vector_store %arg16[%c0_45, %c0_46], %67 {strides = array<i32>} : memref<2x128xf32, #tpu.memory_space<vmem>>, vector<2x128xf32>,
    return
  }
}

</mosaic_0001>

<llo_original>
// kernel: mlp_cnn_forward.1
$region0: #{mlp_cnn_forward.1}
  #allocation0 [shape = 'u32[]', space=smem, size = 0x4, offset = 0x4, fixed_abs, tag = 'smem constant byte address 0x4 - core index']
  #allocation1 [shape = 'u32[144,128]{1,0:T(1,128)}', space=vmem, size = 0x12000, scoped, tag = 'internal scratch']
  %s0 = inlined_call_operand.vmem [shape: f32[512,36], index: 0, kind: input, shape index: {}]
  %s1 = inlined_call_operand.vmem [shape: f32[2,512], index: 1, kind: input, shape index: {}]
  %s2 = inlined_call_operand.vmem [shape: f32[2,8], index: 2, kind: input, shape index: {}]
  %s3 = inlined_call_operand.vmem [shape: f32[36,128], index: 3, kind: input, shape index: {}]
  %s4 = inlined_call_operand.vmem [shape: f32[1,128], index: 4, kind: input, shape index: {}]
  %s5 = inlined_call_operand.vmem [shape: f32[128,2], index: 5, kind: input, shape index: {}]
  %s6 = inlined_call_operand.vmem [shape: f32[1,2], index: 6, kind: input, shape index: {}]
  %s7 = inlined_call_operand.vmem [shape: f32[8,256], index: 7, kind: input, shape index: {}]
  %s8 = inlined_call_operand.vmem [shape: f32[1,256], index: 8, kind: input, shape index: {}]
  %s9 = inlined_call_operand.vmem [shape: f32[1,256], index: 9, kind: input, shape index: {}]
  %s10 = inlined_call_operand.vmem [shape: f32[256,256], index: 10, kind: input, shape index: {}]
  %s11 = inlined_call_operand.vmem [shape: f32[1,256], index: 11, kind: input, shape index: {}]
  %s12 = inlined_call_operand.vmem [shape: f32[256,256], index: 12, kind: input, shape index: {}]
  %s13 = inlined_call_operand.vmem [shape: f32[1,256], index: 13, kind: input, shape index: {}]
  %s14 = inlined_call_operand.vmem [shape: f32[256,128], index: 14, kind: input, shape index: {}]
  %s15 = inlined_call_operand.vmem [shape: f32[1,128], index: 15, kind: input, shape index: {}]
  %s16 = inlined_call_operand.hbm [shape: f32[2,128], index: 16, kind: output, shape index: {}]
  %s17 = sld [smem:[#allocation0]]
  $region74: #{mlp_cnn_forward.1} parent=0
    _
  %s19 = ssub.s32 1, %s17
  %s20 = scalar_select 0, %s19, %s17
  $region1: #{mlp_cnn_forward.1} parent=0
    #allocation2 [shape = 'u8[1024]{0}', space=vmem, size = 0x400, scoped, tag = 'output window, operand 0, single buffered']
    #allocation3 [shape = 's32[1]{0}', space=sflag, size = 0x4, scoped, tag = 'scoped memory for mlp_cnn_forward.1']
    %21 = vsyncpa [#allocation3], 0
    // Predicated region
    $region2: #{mlp_cnn_forward.1} parent=1 // pred_check
      _
    $region3: #{mlp_cnn_forward.1} parent=1 // pred_check_branch
      %23 = sbr.rel (0) target = $region5
    $region4: #{mlp_cnn_forward.1} parent=1 // pred_region
      _
    $region5: #{mlp_cnn_forward.1} parent=1 // pred_fallthru
      _
    // Predicated region
    $region6: #{mlp_cnn_forward.1} parent=1 // pred_check
      _
    $region7: #{mlp_cnn_forward.1} parent=1 // pred_check_branch
      %25 = sbr.rel (0) target = $region9
    $region8: #{mlp_cnn_forward.1} parent=1 // pred_region
      _
    $region9: #{mlp_cnn_forward.1} parent=1 // pred_fallthru
      _
    // Predicated region
    $region10: #{mlp_cnn_forward.1} parent=1 // pred_check
      _
    $region11: #{mlp_cnn_forward.1} parent=1 // pred_check_branch
      %27 = sbr.rel (0) target = $region13
    $region12: #{mlp_cnn_forward.1} parent=1 // pred_region
      _
    $region13: #{mlp_cnn_forward.1} parent=1 // pred_fallthru
      _
    // Predicated region
    $region14: #{mlp_cnn_forward.1} parent=1 // pred_check
      _
    $region15: #{mlp_cnn_forward.1} parent=1 // pred_check_branch
      %29 = sbr.rel (0) target = $region17
    $region16: #{mlp_cnn_forward.1} parent=1 // pred_region
      _
    $region17: #{mlp_cnn_forward.1} parent=1 // pred_fallthru
      _
    // Predicated region
    $region18: #{mlp_cnn_forward.1} parent=1 // pred_check
      _
    $region19: #{mlp_cnn_forward.1} parent=1 // pred_check_branch
      %31 = sbr.rel (0) target = $region21
    $region20: #{mlp_cnn_forward.1} parent=1 // pred_region
      _
    $region21: #{mlp_cnn_forward.1} parent=1 // pred_fallthru
      _
    // Predicated region
    $region22: #{mlp_cnn_forward.1} parent=1 // pred_check
      _
    $region23: #{mlp_cnn_forward.1} parent=1 // pred_check_branch
      %33 = sbr.rel (0) target = $region25
    $region24: #{mlp_cnn_forward.1} parent=1 // pred_region
      _
    $region25: #{mlp_cnn_forward.1} parent=1 // pred_fallthru
      _
    // Predicated region
    $region26: #{mlp_cnn_forward.1} parent=1 // pred_check
      _
    $region27: #{mlp_cnn_forward.1} parent=1 // pred_check_branch
      %35 = sbr.rel (0) target = $region29
    $region28: #{mlp_cnn_forward.1} parent=1 // pred_region
      _
    $region29: #{mlp_cnn_forward.1} parent=1 // pred_fallthru
      _
    // Predicated region
    $region30: #{mlp_cnn_forward.1} parent=1 // pred_check
      _
    $region31: #{mlp_cnn_forward.1} parent=1 // pred_check_branch
      %37 = sbr.rel (0) target = $region33
    $region32: #{mlp_cnn_forward.1} parent=1 // pred_region
      _
    $region33: #{mlp_cnn_forward.1} parent=1 // pred_fallthru
      _
    // Predicated region
    $region34: #{mlp_cnn_forward.1} parent=1 // pred_check
      _
    $region35: #{mlp_cnn_forward.1} parent=1 // pred_check_branch
      %39 = sbr.rel (0) target = $region37
    $region36: #{mlp_cnn_forward.1} parent=1 // pred_region
      _
    $region37: #{mlp_cnn_forward.1} parent=1 // pred_fallthru
      _
    // Predicated region
    $region38: #{mlp_cnn_forward.1} parent=1 // pred_check
      _
    $region39: #{mlp_cnn_forward.1} parent=1 // pred_check_branch
      %41 = sbr.rel (0) target = $region41
    $region40: #{mlp_cnn_forward.1} parent=1 // pred_region
      _
    $region41: #{mlp_cnn_forward.1} parent=1 // pred_fallthru
      _
    // Predicated region
    $region42: #{mlp_cnn_forward.1} parent=1 // pred_check
      _
    $region43: #{mlp_cnn_forward.1} parent=1 // pred_check_branch
      %43 = sbr.rel (0) target = $region45
    $region44: #{mlp_cnn_forward.1} parent=1 // pred_region
      _
    $region45: #{mlp_cnn_forward.1} parent=1 // pred_fallthru
      _
    // Predicated region
    $region46: #{mlp_cnn_forward.1} parent=1 // pred_check
      _
    $region47: #{mlp_cnn_forward.1} parent=1 // pred_check_branch
      %45 = sbr.rel (0) target = $region49
    $region48: #{mlp_cnn_forward.1} parent=1 // pred_region
      _
    $region49: #{mlp_cnn_forward.1} parent=1 // pred_fallthru
      _
    // Predicated region
    $region50: #{mlp_cnn_forward.1} parent=1 // pred_check
      _
    $region51: #{mlp_cnn_forward.1} parent=1 // pred_check_branch
      %47 = sbr.rel (0) target = $region53
    $region52: #{mlp_cnn_forward.1} parent=1 // pred_region
      _
    $region53: #{mlp_cnn_forward.1} parent=1 // pred_fallthru
      _
    // Predicated region
    $region54: #{mlp_cnn_forward.1} parent=1 // pred_check
      _
    $region55: #{mlp_cnn_forward.1} parent=1 // pred_check_branch
      %49 = sbr.rel (0) target = $region57
    $region56: #{mlp_cnn_forward.1} parent=1 // pred_region
      _
    $region57: #{mlp_cnn_forward.1} parent=1 // pred_fallthru
      _
    // Predicated region
    $region58: #{mlp_cnn_forward.1} parent=1 // pred_check
      _
    $region59: #{mlp_cnn_forward.1} parent=1 // pred_check_branch
      %51 = sbr.rel (0) target = $region61
    $region60: #{mlp_cnn_forward.1} parent=1 // pred_region
      _
    $region61: #{mlp_cnn_forward.1} parent=1 // pred_fallthru
      _
    // Predicated region
    $region62: #{mlp_cnn_forward.1} parent=1 // pred_check
      _
    $region63: #{mlp_cnn_forward.1} parent=1 // pred_check_branch
      %53 = sbr.rel (0) target = $region65
    $region64: #{mlp_cnn_forward.1} parent=1 // pred_region
      _
    $region65: #{mlp_cnn_forward.1} parent=1 // pred_fallthru
      _
    %v54 = vld [vmem:[%s0] sm:$0xff]
    %v55 = vld [vmem:[%s0 + $0x8] sm:$0xff]
    %v56 = vld [vmem:[%s0 + $0x10] sm:$0xff]
    %v57 = vld [vmem:[%s0 + $0x18] sm:$0xff]
    %v58 = vld [vmem:[%s0 + $0x20] sm:$0xff]
    %v59 = vld [vmem:[%s0 + $0x28] sm:$0xff]
    %v60 = vld [vmem:[%s0 + $0x30] sm:$0xff]
    %v61 = vld [vmem:[%s0 + $0x38] sm:$0xff]
    %v62 = vld [vmem:[%s0 + $0x40] sm:$0xff]
    %v63 = vld [vmem:[%s0 + $0x48] sm:$0xff]
    %v64 = vld [vmem:[%s0 + $0x50] sm:$0xff]
    %v65 = vld [vmem:[%s0 + $0x58] sm:$0xff]
    %v66 = vld [vmem:[%s0 + $0x60] sm:$0xff]
    %v67 = vld [vmem:[%s0 + $0x68] sm:$0xff]
    %v68 = vld [vmem:[%s0 + $0x70] sm:$0xff]
    %v69 = vld [vmem:[%s0 + $0x78] sm:$0xff]
    %v70 = vld [vmem:[%s0 + $0x80] sm:$0xff]
    %v71 = vld [vmem:[%s0 + $0x88] sm:$0xff]
    %v72 = vld [vmem:[%s0 + $0x90] sm:$0xff]
    %v73 = vld [vmem:[%s0 + $0x98] sm:$0xff]
    %v74 = vld [vmem:[%s0 + $0xa0] sm:$0xff]
    %v75 = vld [vmem:[%s0 + $0xa8] sm:$0xff]
    %v76 = vld [vmem:[%s0 + $0xb0] sm:$0xff]
    %v77 = vld [vmem:[%s0 + $0xb8] sm:$0xff]
    %v78 = vld [vmem:[%s0 + $0xc0] sm:$0xff]
    %v79 = vld [vmem:[%s0 + $0xc8] sm:$0xff]
    %v80 = vld [vmem:[%s0 + $0xd0] sm:$0xff]
    %v81 = vld [vmem:[%s0 + $0xd8] sm:$0xff]
    %v82 = vld [vmem:[%s0 + $0xe0] sm:$0xff]
    %v83 = vld [vmem:[%s0 + $0xe8] sm:$0xff]
    %v84 = vld [vmem:[%s0 + $0xf0] sm:$0xff]
    %v85 = vld [vmem:[%s0 + $0xf8] sm:$0xff]
    %v86 = vld [vmem:[%s0 + $0x100] sm:$0xff]
    %v87 = vld [vmem:[%s0 + $0x108] sm:$0xff]
    %v88 = vld [vmem:[%s0 + $0x110] sm:$0xff]
    %v89 = vld [vmem:[%s0 + $0x118] sm:$0xff]
    %v90 = vld [vmem:[%s0 + $0x120] sm:$0xff]
    %v91 = vld [vmem:[%s0 + $0x128] sm:$0xff]
    %v92 = vld [vmem:[%s0 + $0x130] sm:$0xff]
    %v93 = vld [vmem:[%s0 + $0x138] sm:$0xff]
    %v94 = vld [vmem:[%s0 + $0x140] sm:$0xff]
    %v95 = vld [vmem:[%s0 + $0x148] sm:$0xff]
    %v96 = vld [vmem:[%s0 + $0x150] sm:$0xff]
    %v97 = vld [vmem:[%s0 + $0x158] sm:$0xff]
    %v98 = vld [vmem:[%s0 + $0x160] sm:$0xff]
    %v99 = vld [vmem:[%s0 + $0x168] sm:$0xff]
    %v100 = vld [vmem:[%s0 + $0x170] sm:$0xff]
    %v101 = vld [vmem:[%s0 + $0x178] sm:$0xff]
    %v102 = vld [vmem:[%s0 + $0x180] sm:$0xff]
    %v103 = vld [vmem:[%s0 + $0x188] sm:$0xff]
    %v104 = vld [vmem:[%s0 + $0x190] sm:$0xff]
    %v105 = vld [vmem:[%s0 + $0x198] sm:$0xff]
    %v106 = vld [vmem:[%s0 + $0x1a0] sm:$0xff]
    %v107 = vld [vmem:[%s0 + $0x1a8] sm:$0xff]
    %v108 = vld [vmem:[%s0 + $0x1b0] sm:$0xff]
    %v109 = vld [vmem:[%s0 + $0x1b8] sm:$0xff]
    %v110 = vld [vmem:[%s0 + $0x1c0] sm:$0xff]
    %v111 = vld [vmem:[%s0 + $0x1c8] sm:$0xff]
    %v112 = vld [vmem:[%s0 + $0x1d0] sm:$0xff]
    %v113 = vld [vmem:[%s0 + $0x1d8] sm:$0xff]
    %v114 = vld [vmem:[%s0 + $0x1e0] sm:$0xff]
    %v115 = vld [vmem:[%s0 + $0x1e8] sm:$0xff]
    %v116 = vld [vmem:[%s0 + $0x1f0] sm:$0xff]
    %v117 = vld [vmem:[%s0 + $0x1f8] sm:$0xff]
    %v118 = vld [vmem:[%s3] sm:$0xff]
    %v119 = vld [vmem:[%s3 + $0x8] sm:$0xff]
    %v120 = vld [vmem:[%s3 + $0x10] sm:$0xff]
    %v121 = vld [vmem:[%s3 + $0x18] sm:$0xff]
    %v122 = vld [vmem:[%s3 + $0x20] sm:$0xf]
    %v123 = vld [vmem:[%s4] sm:$0x1]
    %v125 = vlaneseq
    %v126 = vshrl.u32 %v125, 7
    %v127 = vsub.s32 0, %v126
    %v128 = vrot.slane %v123, %v127
    %vm130 = vcmask 293888
    %v132 = vsel %vm130, %v54, 0
    %v135 = vsel %vm130, %v55, 0
    %v138 = vsel %vm130, %v56, 0
    %v141 = vsel %vm130, %v57, 0
    %v144 = vsel %vm130, %v58, 0
    %v147 = vsel %vm130, %v59, 0
    %v150 = vsel %vm130, %v60, 0
    %v153 = vsel %vm130, %v61, 0
    %v156 = vsel %vm130, %v62, 0
    %v159 = vsel %vm130, %v63, 0
    %v162 = vsel %vm130, %v64, 0
    %v165 = vsel %vm130, %v65, 0
    %v168 = vsel %vm130, %v66, 0
    %v171 = vsel %vm130, %v67, 0
    %v174 = vsel %vm130, %v68, 0
    %v177 = vsel %vm130, %v69, 0
    %v180 = vsel %vm130, %v70, 0
    %v183 = vsel %vm130, %v71, 0
    %v186 = vsel %vm130, %v72, 0
    %v189 = vsel %vm130, %v73, 0
    %v192 = vsel %vm130, %v74, 0
    %v195 = vsel %vm130, %v75, 0
    %v198 = vsel %vm130, %v76, 0
    %v201 = vsel %vm130, %v77, 0
    %v204 = vsel %vm130, %v78, 0
    %v207 = vsel %vm130, %v79, 0
    %v210 = vsel %vm130, %v80, 0
    %v213 = vsel %vm130, %v81, 0
    %v216 = vsel %vm130, %v82, 0
    %v219 = vsel %vm130, %v83, 0
    %v222 = vsel %vm130, %v84, 0
    %v225 = vsel %vm130, %v85, 0
    %v228 = vsel %vm130, %v86, 0
    %v231 = vsel %vm130, %v87, 0
    %v234 = vsel %vm130, %v88, 0
    %v237 = vsel %vm130, %v89, 0
    %v240 = vsel %vm130, %v90, 0
    %v243 = vsel %vm130, %v91, 0
    %v246 = vsel %vm130, %v92, 0
    %v249 = vsel %vm130, %v93, 0
    %v252 = vsel %vm130, %v94, 0
    %v255 = vsel %vm130, %v95, 0
    %v258 = vsel %vm130, %v96, 0
    %v261 = vsel %vm130, %v97, 0
    %v264 = vsel %vm130, %v98, 0
    %v267 = vsel %vm130, %v99, 0
    %v270 = vsel %vm130, %v100, 0
    %v273 = vsel %vm130, %v101, 0
    %v276 = vsel %vm130, %v102, 0
    %v279 = vsel %vm130, %v103, 0
    %v282 = vsel %vm130, %v104, 0
    %v285 = vsel %vm130, %v105, 0
    %v288 = vsel %vm130, %v106, 0
    %v291 = vsel %vm130, %v107, 0
    %v294 = vsel %vm130, %v108, 0
    %v297 = vsel %vm130, %v109, 0
    %v300 = vsel %vm130, %v110, 0
    %v303 = vsel %vm130, %v111, 0
    %v306 = vsel %vm130, %v112, 0
    %v309 = vsel %vm130, %v113, 0
    %v312 = vsel %vm130, %v114, 0
    %v315 = vsel %vm130, %v115, 0
    %v318 = vsel %vm130, %v116, 0
    %v321 = vsel %vm130, %v117, 0
    %vm323 = vcmask 1043456
    %v325 = vsel %vm323, %v122, 0
    %327 = vmatprep.subr.mxu0 0.0
    %328 = vmatpush1.msra.mxu0 %v118
    %329 = vmatprep.subr.mxu0 0.0
    %330 = vmatpush1.msra.mxu0 %v119
    %331 = vmatprep.subr.mxu0 0.0
    %332 = vmatpush1.msra.mxu0 %v120
    %333 = vmatprep.subr.mxu0 0.0
    %334 = vmatpush1.msra.mxu0 %v121
    %335 = vmatprep.subr.mxu0 0.0
    %336 = vmatpush1.msra.mxu0 %v325
    %337 = vmatprep.subr.mxu0 0.0
    %338 = vmatpush1.msra.mxu0 0.0
    %339 = vmatprep.subr.mxu0 0.0
    %340 = vmatpush1.msra.mxu0 0.0
    %341 = vmatprep.subr.mxu0 0.0
    %342 = vmatpush1.msra.mxu0 0.0
    %343 = vmatprep.subr.mxu0 0.0
    %344 = vmatpush1.msra.mxu0 0.0
    %345 = vmatprep.subr.mxu0 0.0
    %346 = vmatpush1.msra.mxu0 0.0
    %347 = vmatprep.subr.mxu0 0.0
    %348 = vmatpush1.msra.mxu0 0.0
    %349 = vmatprep.subr.mxu0 0.0
    %350 = vmatpush1.msra.mxu0 0.0
    %351 = vmatprep.subr.mxu0 0.0
    %352 = vmatpush1.msra.mxu0 0.0
    %353 = vmatprep.subr.mxu0 0.0
    %354 = vmatpush1.msra.mxu0 0.0
    %355 = vmatprep.subr.mxu0 0.0
    %356 = vmatpush1.msra.mxu0 0.0
    %357 = vmatprep.subr.mxu0 0.0
    %358 = vmatpush1.msra.mxu0 0.0
    %359 = vmatprep.subr.mxu0 0.0
    %360 = vmatpush1.msra.mxu0 0.0
    %361 = vmatprep.subr.mxu0 0.0
    %362 = vmatpush1.msra.mxu0 0.0
    %363 = vmatprep.subr.mxu0 0.0
    %364 = vmatpush1.msra.mxu0 0.0
    %365 = vmatprep.subr.mxu0 0.0
    %366 = vmatpush1.msra.mxu0 0.0
    %367 = vmatprep.subr.mxu0 0.0
    %368 = vmatpush1.msra.mxu0 0.0
    %369 = vmatprep.subr.mxu0 0.0
    %370 = vmatpush1.msra.mxu0 0.0
    %371 = vmatprep.subr.mxu0 0.0
    %372 = vmatpush1.msra.mxu0 0.0
    %373 = vmatprep.subr.mxu0 0.0
    %374 = vmatpush1.msra.mxu0 0.0
    %375 = vmatprep.subr.mxu0 0.0
    %376 = vmatpush1.msra.mxu0 0.0
    %377 = vmatprep.subr.mxu0 0.0
    %378 = vmatpush1.msra.mxu0 0.0
    %379 = vmatprep.subr.mxu0 0.0
    %380 = vmatpush1.msra.mxu0 0.0
    %381 = vmatprep.subr.mxu0 0.0
    %382 = vmatpush1.msra.mxu0 0.0
    %383 = vmatprep.subr.mxu0 0.0
    %384 = vmatpush1.msra.mxu0 0.0
    %385 = vmatprep.subr.mxu0 0.0
    %386 = vmatpush1.msra.mxu0 0.0
    %387 = vmatprep.subr.mxu0 0.0
    %388 = vmatpush1.msra.mxu0 0.0
    %389 = vmatprep.subr.mxu0 0.0
    %390 = vmatpush1.msra.mxu0 0.0
    %391 = vmatprep.mubr.f32.mxu0 0.0
    %392 = vmatmul.mubr.f32.gmra.mrb[0].mxu0 %v132
    %v393 = vpop.f32.mrb[0].mxu0
    %v394 = vadd.f32 %v128, %v393
    %v395 = vpop.f32.mrb[0].mxu0
    %396 = vmatprep.mubr.f32.mxu0 0.0
    %397 = vmatmul.mubr.f32.gmra.mrb[0].mxu0 %v135
    %v398 = vpop.f32.mrb[0].mxu0
    %v399 = vadd.f32 %v128, %v398
    %v400 = vpop.f32.mrb[0].mxu0
    %401 = vmatprep.mubr.f32.mxu0 0.0
    %402 = vmatmul.mubr.f32.gmra.mrb[0].mxu0 %v138
    %v403 = vpop.f32.mrb[0].mxu0
    %v404 = vadd.f32 %v128, %v403
    %v405 = vpop.f32.mrb[0].mxu0
    %406 = vmatprep.mubr.f32.mxu0 0.0
    %407 = vmatmul.mubr.f32.gmra.mrb[0].mxu0 %v141
    %v408 = vpop.f32.mrb[0].mxu0
    %v409 = vadd.f32 %v128, %v408
    %v410 = vpop.f32.mrb[0].mxu0
    %411 = vmatprep.mubr.f32.mxu0 0.0
    %412 = vmatmul.mubr.f32.gmra.mrb[0].mxu0 %v144
    %v413 = vpop.f32.mrb[0].mxu0
    %v414 = vadd.f32 %v128, %v413
    %v415 = vpop.f32.mrb[0].mxu0
    %416 = vmatprep.mubr.f32.mxu0 0.0
    %417 = vmatmul.mubr.f32.gmra.mrb[0].mxu0 %v147
    %v418 = vpop.f32.mrb[0].mxu0
    %v419 = vadd.f32 %v128, %v418
    %v420 = vpop.f32.mrb[0].mxu0
    %421 = vmatprep.mubr.f32.mxu0 0.0
    %422 = vmatmul.mubr.f32.gmra.mrb[0].mxu0 %v150
    %v423 = vpop.f32.mrb[0].mxu0
    %v424 = vadd.f32 %v128, %v423
    %v425 = vpop.f32.mrb[0].mxu0
    %426 = vmatprep.mubr.f32.mxu0 0.0
    %427 = vmatmul.mubr.f32.gmra.mrb[0].mxu0 %v153
    %v428 = vpop.f32.mrb[0].mxu0
    %v429 = vadd.f32 %v128, %v428
    %v430 = vpop.f32.mrb[0].mxu0
    %431 = vmatprep.mubr.f32.mxu0 0.0
    %432 = vmatmul.mubr.f32.gmra.mrb[0].mxu0 %v156
    %v433 = vpop.f32.mrb[0].mxu0
    %v434 = vadd.f32 %v128, %v433
    %v435 = vpop.f32.mrb[0].mxu0
    %436 = vmatprep.mubr.f32.mxu0 0.0
    %437 = vmatmul.mubr.f32.gmra.mrb[0].mxu0 %v159
    %v438 = vpop.f32.mrb[0].mxu0
    %v439 = vadd.f32 %v128, %v438
    %v440 = vpop.f32.mrb[0].mxu0
    %441 = vmatprep.mubr.f32.mxu0 0.0
    %442 = vmatmul.mubr.f32.gmra.mrb[0].mxu0 %v162
    %v443 = vpop.f32.mrb[0].mxu0
    %v444 = vadd.f32 %v128, %v443
    %v445 = vpop.f32.mrb[0].mxu0
    %446 = vmatprep.mubr.f32.mxu0 0.0
    %447 = vmatmul.mubr.f32.gmra.mrb[0].mxu0 %v165
    %v448 = vpop.f32.mrb[0].mxu0
    %v449 = vadd.f32 %v128, %v448
    %v450 = vpop.f32.mrb[0].mxu0
    %451 = vmatprep.mubr.f32.mxu0 0.0
    %452 = vmatmul.mubr.f32.gmra.mrb[0].mxu0 %v168
    %v453 = vpop.f32.mrb[0].mxu0
    %v454 = vadd.f32 %v128, %v453
    %v455 = vpop.f32.mrb[0].mxu0
    %456 = vmatprep.mubr.f32.mxu0 0.0
    %457 = vmatmul.mubr.f32.gmra.mrb[0].mxu0 %v171
    %v458 = vpop.f32.mrb[0].mxu0
    %v459 = vadd.f32 %v128, %v458
    %v460 = vpop.f32.mrb[0].mxu0
    %461 = vmatprep.mubr.f32.mxu0 0.0
    %462 = vmatmul.mubr.f32.gmra.mrb[0].mxu0 %v174
    %v463 = vpop.f32.mrb[0].mxu0
    %v464 = vadd.f32 %v128, %v463
    %v465 = vpop.f32.mrb[0].mxu0
    %466 = vmatprep.mubr.f32.mxu0 0.0
    %467 = vmatmul.mubr.f32.gmra.mrb[0].mxu0 %v177
    %v468 = vpop.f32.mrb[0].mxu0
    %v469 = vadd.f32 %v128, %v468
    %v470 = vpop.f32.mrb[0].mxu0
    %471 = vmatprep.mubr.f32.mxu0 0.0
    %472 = vmatmul.mubr.f32.gmra.mrb[0].mxu0 %v180
    %v473 = vpop.f32.mrb[0].mxu0
    %v474 = vadd.f32 %v128, %v473
    %v475 = vpop.f32.mrb[0].mxu0
    %476 = vmatprep.mubr.f32.mxu0 0.0
    %477 = vmatmul.mubr.f32.gmra.mrb[0].mxu0 %v183
    %v478 = vpop.f32.mrb[0].mxu0
    %v479 = vadd.f32 %v128, %v478
    %v480 = vpop.f32.mrb[0].mxu0
    %481 = vmatprep.mubr.f32.mxu0 0.0
    %482 = vmatmul.mubr.f32.gmra.mrb[0].mxu0 %v186
    %v483 = vpop.f32.mrb[0].mxu0
    %v484 = vadd.f32 %v128, %v483
    %v485 = vpop.f32.mrb[0].mxu0
    %486 = vmatprep.mubr.f32.mxu0 0.0
    %487 = vmatmul.mubr.f32.gmra.mrb[0].mxu0 %v189
    %v488 = vpop.f32.mrb[0].mxu0
    %v489 = vadd.f32 %v128, %v488
    %v490 = vpop.f32.mrb[0].mxu0
    %491 = vmatprep.mubr.f32.mxu0 0.0
    %492 = vmatmul.mubr.f32.gmra.mrb[0].mxu0 %v192
    %v493 = vpop.f32.mrb[0].mxu0
    %v494 = vadd.f32 %v128, %v493
    %v495 = vpop.f32.mrb[0].mxu0
    %496 = vmatprep.mubr.f32.mxu0 0.0
    %497 = vmatmul.mubr.f32.gmra.mrb[0].mxu0 %v195
    %v498 = vpop.f32.mrb[0].mxu0
    %v499 = vadd.f32 %v128, %v498
    %v500 = vpop.f32.mrb[0].mxu0
    %501 = vmatprep.mubr.f32.mxu0 0.0
    %502 = vmatmul.mubr.f32.gmra.mrb[0].mxu0 %v198
    %v503 = vpop.f32.mrb[0].mxu0
    %v504 = vadd.f32 %v128, %v503
    %v505 = vpop.f32.mrb[0].mxu0
    %506 = vmatprep.mubr.f32.mxu0 0.0
    %507 = vmatmul.mubr.f32.gmra.mrb[0].mxu0 %v201
    %v508 = vpop.f32.mrb[0].mxu0
    %v509 = vadd.f32 %v128, %v508
    %v510 = vpop.f32.mrb[0].mxu0
    %511 = vmatprep.mubr.f32.mxu0 0.0
    %512 = vmatmul.mubr.f32.gmra.mrb[0].mxu0 %v204
    %v513 = vpop.f32.mrb[0].mxu0
    %v514 = vadd.f32 %v128, %v513
    %v515 = vpop.f32.mrb[0].mxu0
    %516 = vmatprep.mubr.f32.mxu0 0.0
    %517 = vmatmul.mubr.f32.gmra.mrb[0].mxu0 %v207
    %v518 = vpop.f32.mrb[0].mxu0
    %v519 = vadd.f32 %v128, %v518
    %v520 = vpop.f32.mrb[0].mxu0
    %521 = vmatprep.mubr.f32.mxu0 0.0
    %522 = vmatmul.mubr.f32.gmra.mrb[0].mxu0 %v210
    %v523 = vpop.f32.mrb[0].mxu0
    %v524 = vadd.f32 %v128, %v523
    %v525 = vpop.f32.mrb[0].mxu0
    %526 = vmatprep.mubr.f32.mxu0 0.0
    %527 = vmatmul.mubr.f32.gmra.mrb[0].mxu0 %v213
    %v528 = vpop.f32.mrb[0].mxu0
    %v529 = vadd.f32 %v128, %v528
    %v530 = vpop.f32.mrb[0].mxu0
    %531 = vmatprep.mubr.f32.mxu0 0.0
    %532 = vmatmul.mubr.f32.gmra.mrb[0].mxu0 %v216
    %v533 = vpop.f32.mrb[0].mxu0
    %v534 = vadd.f32 %v128, %v533
    %v535 = vpop.f32.mrb[0].mxu0
    %536 = vmatprep.mubr.f32.mxu0 0.0
    %537 = vmatmul.mubr.f32.gmra.mrb[0].mxu0 %v219
    %v538 = vpop.f32.mrb[0].mxu0
    %v539 = vadd.f32 %v128, %v538
    %v540 = vpop.f32.mrb[0].mxu0
    %541 = vmatprep.mubr.f32.mxu0 0.0
    %542 = vmatmul.mubr.f32.gmra.mrb[0].mxu0 %v222
    %v543 = vpop.f32.mrb[0].mxu0
    %v544 = vadd.f32 %v128, %v543
    %v545 = vpop.f32.mrb[0].mxu0
    %546 = vmatprep.mubr.f32.mxu0 0.0
    %547 = vmatmul.mubr.f32.gmra.mrb[0].mxu0 %v225
    %v548 = vpop.f32.mrb[0].mxu0
    %v549 = vadd.f32 %v128, %v548
    %v550 = vpop.f32.mrb[0].mxu0
    %551 = vmatprep.mubr.f32.mxu0 0.0
    %552 = vmatmul.mubr.f32.gmra.mrb[0].mxu0 %v228
    %v553 = vpop.f32.mrb[0].mxu0
    %v554 = vadd.f32 %v128, %v553
    %v555 = vpop.f32.mrb[0].mxu0
    %556 = vmatprep.mubr.f32.mxu0 0.0
    %557 = vmatmul.mubr.f32.gmra.mrb[0].mxu0 %v231
    %v558 = vpop.f32.mrb[0].mxu0
    %v559 = vadd.f32 %v128, %v558
    %v560 = vpop.f32.mrb[0].mxu0
    %561 = vmatprep.mubr.f32.mxu0 0.0
    %562 = vmatmul.mubr.f32.gmra.mrb[0].mxu0 %v234
    %v563 = vpop.f32.mrb[0].mxu0
    %v564 = vadd.f32 %v128, %v563
    %v565 = vpop.f32.mrb[0].mxu0
    %566 = vmatprep.mubr.f32.mxu0 0.0
    %567 = vmatmul.mubr.f32.gmra.mrb[0].mxu0 %v237
    %v568 = vpop.f32.mrb[0].mxu0
    %v569 = vadd.f32 %v128, %v568
    %v570 = vpop.f32.mrb[0].mxu0
    %571 = vmatprep.mubr.f32.mxu0 0.0
    %572 = vmatmul.mubr.f32.gmra.mrb[0].mxu0 %v240
    %v573 = vpop.f32.mrb[0].mxu0
    %v574 = vadd.f32 %v128, %v573
    %v575 = vpop.f32.mrb[0].mxu0
    %576 = vmatprep.mubr.f32.mxu0 0.0
    %577 = vmatmul.mubr.f32.gmra.mrb[0].mxu0 %v243
    %v578 = vpop.f32.mrb[0].mxu0
    %v579 = vadd.f32 %v128, %v578
    %v580 = vpop.f32.mrb[0].mxu0
    %581 = vmatprep.mubr.f32.mxu0 0.0
    %582 = vmatmul.mubr.f32.gmra.mrb[0].mxu0 %v246
    %v583 = vpop.f32.mrb[0].mxu0
    %v584 = vadd.f32 %v128, %v583
    %v585 = vpop.f32.mrb[0].mxu0
    %586 = vmatprep.mubr.f32.mxu0 0.0
    %587 = vmatmul.mubr.f32.gmra.mrb[0].mxu0 %v249
    %v588 = vpop.f32.mrb[0].mxu0
    %v589 = vadd.f32 %v128, %v588
    %v590 = vpop.f32.mrb[0].mxu0
    %591 = vmatprep.mubr.f32.mxu0 0.0
    %592 = vmatmul.mubr.f32.gmra.mrb[0].mxu0 %v252
    %v593 = vpop.f32.mrb[0].mxu0
    %v594 = vadd.f32 %v128, %v593
    %v595 = vpop.f32.mrb[0].mxu0
    %596 = vmatprep.mubr.f32.mxu0 0.0
    %597 = vmatmul.mubr.f32.gmra.mrb[0].mxu0 %v255
    %v598 = vpop.f32.mrb[0].mxu0
    %v599 = vadd.f32 %v128, %v598
    %v600 = vpop.f32.mrb[0].mxu0
    %601 = vmatprep.mubr.f32.mxu0 0.0
    %602 = vmatmul.mubr.f32.gmra.mrb[0].mxu0 %v258
    %v603 = vpop.f32.mrb[0].mxu0
    %v604 = vadd.f32 %v128, %v603
    %v605 = vpop.f32.mrb[0].mxu0
    %606 = vmatprep.mubr.f32.mxu0 0.0
    %607 = vmatmul.mubr.f32.gmra.mrb[0].mxu0 %v261
    %v608 = vpop.f32.mrb[0].mxu0
    %v609 = vadd.f32 %v128, %v608
    %v610 = vpop.f32.mrb[0].mxu0
    %611 = vmatprep.mubr.f32.mxu0 0.0
    %612 = vmatmul.mubr.f32.gmra.mrb[0].mxu0 %v264
    %v613 = vpop.f32.mrb[0].mxu0
    %v614 = vadd.f32 %v128, %v613
    %v615 = vpop.f32.mrb[0].mxu0
    %616 = vmatprep.mubr.f32.mxu0 0.0
    %617 = vmatmul.mubr.f32.gmra.mrb[0].mxu0 %v267
    %v618 = vpop.f32.mrb[0].mxu0
    %v619 = vadd.f32 %v128, %v618
    %v620 = vpop.f32.mrb[0].mxu0
    %621 = vmatprep.mubr.f32.mxu0 0.0
    %622 = vmatmul.mubr.f32.gmra.mrb[0].mxu0 %v270
    %v623 = vpop.f32.mrb[0].mxu0
    %v624 = vadd.f32 %v128, %v623
    %v625 = vpop.f32.mrb[0].mxu0
    %626 = vmatprep.mubr.f32.mxu0 0.0
    %627 = vmatmul.mubr.f32.gmra.mrb[0].mxu0 %v273
    %v628 = vpop.f32.mrb[0].mxu0
    %v629 = vadd.f32 %v128, %v628
    %v630 = vpop.f32.mrb[0].mxu0
    %631 = vmatprep.mubr.f32.mxu0 0.0
    %632 = vmatmul.mubr.f32.gmra.mrb[0].mxu0 %v276
    %v633 = vpop.f32.mrb[0].mxu0
    %v634 = vadd.f32 %v128, %v633
    %v635 = vpop.f32.mrb[0].mxu0
    %636 = vmatprep.mubr.f32.mxu0 0.0
    %637 = vmatmul.mubr.f32.gmra.mrb[0].mxu0 %v279
    %v638 = vpop.f32.mrb[0].mxu0
    %v639 = vadd.f32 %v128, %v638
    %v640 = vpop.f32.mrb[0].mxu0
    %641 = vmatprep.mubr.f32.mxu0 0.0
    %642 = vmatmul.mubr.f32.gmra.mrb[0].mxu0 %v282
    %v643 = vpop.f32.mrb[0].mxu0
    %v644 = vadd.f32 %v128, %v643
    %v645 = vpop.f32.mrb[0].mxu0
    %646 = vmatprep.mubr.f32.mxu0 0.0
    %647 = vmatmul.mubr.f32.gmra.mrb[0].mxu0 %v285
    %v648 = vpop.f32.mrb[0].mxu0
    %v649 = vadd.f32 %v128, %v648
    %v650 = vpop.f32.mrb[0].mxu0
    %651 = vmatprep.mubr.f32.mxu0 0.0
    %652 = vmatmul.mubr.f32.gmra.mrb[0].mxu0 %v288
    %v653 = vpop.f32.mrb[0].mxu0
    %v654 = vadd.f32 %v128, %v653
    %v655 = vpop.f32.mrb[0].mxu0
    %656 = vmatprep.mubr.f32.mxu0 0.0
    %657 = vmatmul.mubr.f32.gmra.mrb[0].mxu0 %v291
    %v658 = vpop.f32.mrb[0].mxu0
    %v659 = vadd.f32 %v128, %v658
    %v660 = vpop.f32.mrb[0].mxu0
    %661 = vmatprep.mubr.f32.mxu0 0.0
    %662 = vmatmul.mubr.f32.gmra.mrb[0].mxu0 %v294
    %v663 = vpop.f32.mrb[0].mxu0
    %v664 = vadd.f32 %v128, %v663
    %v665 = vpop.f32.mrb[0].mxu0
    %666 = vmatprep.mubr.f32.mxu0 0.0
    %667 = vmatmul.mubr.f32.gmra.mrb[0].mxu0 %v297
    %v668 = vpop.f32.mrb[0].mxu0
    %v669 = vadd.f32 %v128, %v668
    %v670 = vpop.f32.mrb[0].mxu0
    %671 = vmatprep.mubr.f32.mxu0 0.0
    %672 = vmatmul.mubr.f32.gmra.mrb[0].mxu0 %v300
    %v673 = vpop.f32.mrb[0].mxu0
    %v674 = vadd.f32 %v128, %v673
    %v675 = vpop.f32.mrb[0].mxu0
    %676 = vmatprep.mubr.f32.mxu0 0.0
    %677 = vmatmul.mubr.f32.gmra.mrb[0].mxu0 %v303
    %v678 = vpop.f32.mrb[0].mxu0
    %v679 = vadd.f32 %v128, %v678
    %v680 = vpop.f32.mrb[0].mxu0
    %681 = vmatprep.mubr.f32.mxu0 0.0
    %682 = vmatmul.mubr.f32.gmra.mrb[0].mxu0 %v306
    %v683 = vpop.f32.mrb[0].mxu0
    %v684 = vadd.f32 %v128, %v683
    %v685 = vpop.f32.mrb[0].mxu0
    %686 = vmatprep.mubr.f32.mxu0 0.0
    %687 = vmatmul.mubr.f32.gmra.mrb[0].mxu0 %v309
    %v688 = vpop.f32.mrb[0].mxu0
    %v689 = vadd.f32 %v128, %v688
    %v690 = vpop.f32.mrb[0].mxu0
    %691 = vmatprep.mubr.f32.mxu0 0.0
    %692 = vmatmul.mubr.f32.gmra.mrb[0].mxu0 %v312
    %v693 = vpop.f32.mrb[0].mxu0
    %v694 = vadd.f32 %v128, %v693
    %v695 = vpop.f32.mrb[0].mxu0
    %696 = vmatprep.mubr.f32.mxu0 0.0
    %697 = vmatmul.mubr.f32.gmra.mrb[0].mxu0 %v315
    %v698 = vpop.f32.mrb[0].mxu0
    %v699 = vadd.f32 %v128, %v698
    %v700 = vpop.f32.mrb[0].mxu0
    %701 = vmatprep.mubr.f32.mxu0 0.0
    %702 = vmatmul.mubr.f32.gmra.mrb[0].mxu0 %v318
    %v703 = vpop.f32.mrb[0].mxu0
    %v704 = vadd.f32 %v128, %v703
    %v705 = vpop.f32.mrb[0].mxu0
    %706 = vmatprep.mubr.f32.mxu0 0.0
    %707 = vmatmul.mubr.f32.gmra.mrb[0].mxu0 %v321
    %v708 = vpop.f32.mrb[0].mxu0
    %v709 = vadd.f32 %v128, %v708
    %v710 = vpop.f32.mrb[0].mxu0
    %711 = vdwg.mxu0
    %v712 = vmax.f32 %v394, 0.0
    %v713 = vmax.f32 %v399, 0.0
    %v714 = vmax.f32 %v404, 0.0
    %v715 = vmax.f32 %v409, 0.0
    %v716 = vmax.f32 %v414, 0.0
    %v717 = vmax.f32 %v419, 0.0
    %v718 = vmax.f32 %v424, 0.0
    %v719 = vmax.f32 %v429, 0.0
    %v720 = vmax.f32 %v434, 0.0
    %v721 = vmax.f32 %v439, 0.0
    %v722 = vmax.f32 %v444, 0.0
    %v723 = vmax.f32 %v449, 0.0
    %v724 = vmax.f32 %v454, 0.0
    %v725 = vmax.f32 %v459, 0.0
    %v726 = vmax.f32 %v464, 0.0
    %v727 = vmax.f32 %v469, 0.0
    %v728 = vmax.f32 %v474, 0.0
    %v729 = vmax.f32 %v479, 0.0
    %v730 = vmax.f32 %v484, 0.0
    %v731 = vmax.f32 %v489, 0.0
    %v732 = vmax.f32 %v494, 0.0
    %v733 = vmax.f32 %v499, 0.0
    %v734 = vmax.f32 %v504, 0.0
    %v735 = vmax.f32 %v509, 0.0
    %v736 = vmax.f32 %v514, 0.0
    %v737 = vmax.f32 %v519, 0.0
    %v738 = vmax.f32 %v524, 0.0
    %v739 = vmax.f32 %v529, 0.0
    %v740 = vmax.f32 %v534, 0.0
    %v741 = vmax.f32 %v539, 0.0
    %v742 = vmax.f32 %v544, 0.0
    %v743 = vmax.f32 %v549, 0.0
    %v744 = vmax.f32 %v554, 0.0
    %v745 = vmax.f32 %v559, 0.0
    %v746 = vmax.f32 %v564, 0.0
    %v747 = vmax.f32 %v569, 0.0
    %v748 = vmax.f32 %v574, 0.0
    %v749 = vmax.f32 %v579, 0.0
    %v750 = vmax.f32 %v584, 0.0
    %v751 = vmax.f32 %v589, 0.0
    %v752 = vmax.f32 %v594, 0.0
    %v753 = vmax.f32 %v599, 0.0
    %v754 = vmax.f32 %v604, 0.0
    %v755 = vmax.f32 %v609, 0.0
    %v756 = vmax.f32 %v614, 0.0
    %v757 = vmax.f32 %v619, 0.0
    %v758 = vmax.f32 %v624, 0.0
    %v759 = vmax.f32 %v629, 0.0
    %v760 = vmax.f32 %v634, 0.0
    %v761 = vmax.f32 %v639, 0.0
    %v762 = vmax.f32 %v644, 0.0
    %v763 = vmax.f32 %v649, 0.0
    %v764 = vmax.f32 %v654, 0.0
    %v765 = vmax.f32 %v659, 0.0
    %v766 = vmax.f32 %v664, 0.0
    %v767 = vmax.f32 %v669, 0.0
    %v768 = vmax.f32 %v674, 0.0
    %v769 = vmax.f32 %v679, 0.0
    %v770 = vmax.f32 %v684, 0.0
    %v771 = vmax.f32 %v689, 0.0
    %v772 = vmax.f32 %v694, 0.0
    %v773 = vmax.f32 %v699, 0.0
    %v774 = vmax.f32 %v704, 0.0
    %v775 = vmax.f32 %v709, 0.0
    %v776 = vld [vmem:[%s1] sm:$0xff]
    %v778 = vcombine.high %v776, %v776
    %v780 = vunpack.c.l.s4 1983009808
    %v781 = vunpack.c.0.s8 %v780
    %v782 = vlaneseq
    %v783 = vshrl.u32 %v782, 7
    %v784 = vsub.s32 %v781, %v783
    %v785 = vrot.slane %v776, %v784
    %v787 = vunpack.c.l.s4 1983009808
    %v788 = vunpack.c.0.s8 %v787
    %v789 = vlaneseq
    %v790 = vshrl.u32 %v789, 7
    %v791 = vsub.s32 %v788, %v790
    %v792 = vrot.slane %v778, %v791
    %v793 = vcombine.high %v785, %v785
    %v794 = vcombine.high %v792, %v792
    %799 = vmatprep.subr.mxu0 0.0
    %800 = vmatpush1.msra.mxu0 %v712
    %801 = vmatprep.subr.mxu0 0.0
    %802 = vmatpush1.msra.mxu0 %v713
    %803 = vmatprep.subr.mxu0 0.0
    %804 = vmatpush1.msra.mxu0 %v714
    %805 = vmatprep.subr.mxu0 0.0
    %806 = vmatpush1.msra.mxu0 %v715
    %807 = vmatprep.subr.mxu0 0.0
    %808 = vmatpush1.msra.mxu0 %v716
    %809 = vmatprep.subr.mxu0 0.0
    %810 = vmatpush1.msra.mxu0 %v717
    %811 = vmatprep.subr.mxu0 0.0
    %812 = vmatpush1.msra.mxu0 %v718
    %813 = vmatprep.subr.mxu0 0.0
    %814 = vmatpush1.msra.mxu0 %v719
    %815 = vmatprep.subr.mxu0 0.0
    %816 = vmatpush1.msra.mxu0 %v720
    %817 = vmatprep.subr.mxu0 0.0
    %818 = vmatpush1.msra.mxu0 %v721
    %819 = vmatprep.subr.mxu0 0.0
    %820 = vmatpush1.msra.mxu0 %v722
    %821 = vmatprep.subr.mxu0 0.0
    %822 = vmatpush1.msra.mxu0 %v723
    %823 = vmatprep.subr.mxu0 0.0
    %824 = vmatpush1.msra.mxu0 %v724
    %825 = vmatprep.subr.mxu0 0.0
    %826 = vmatpush1.msra.mxu0 %v725
    %827 = vmatprep.subr.mxu0 0.0
    %828 = vmatpush1.msra.mxu0 %v726
    %829 = vmatprep.subr.mxu0 0.0
    %830 = vmatpush1.msra.mxu0 %v727
    %831 = vmatprep.subr.mxu0 0.0
    %832 = vmatpush1.msra.mxu0 %v728
    %833 = vmatprep.subr.mxu0 0.0
    %834 = vmatpush1.msra.mxu0 %v729
    %835 = vmatprep.subr.mxu0 0.0
    %836 = vmatpush1.msra.mxu0 %v730
    %837 = vmatprep.subr.mxu0 0.0
    %838 = vmatpush1.msra.mxu0 %v731
    %839 = vmatprep.subr.mxu0 0.0
    %840 = vmatpush1.msra.mxu0 %v732
    %841 = vmatprep.subr.mxu0 0.0
    %842 = vmatpush1.msra.mxu0 %v733
    %843 = vmatprep.subr.mxu0 0.0
    %844 = vmatpush1.msra.mxu0 %v734
    %845 = vmatprep.subr.mxu0 0.0
    %846 = vmatpush1.msra.mxu0 %v735
    %847 = vmatprep.subr.mxu0 0.0
    %848 = vmatpush1.msra.mxu0 %v736
    %849 = vmatprep.subr.mxu0 0.0
    %850 = vmatpush1.msra.mxu0 %v737
    %851 = vmatprep.subr.mxu0 0.0
    %852 = vmatpush1.msra.mxu0 %v738
    %853 = vmatprep.subr.mxu0 0.0
    %854 = vmatpush1.msra.mxu0 %v739
    %855 = vmatprep.subr.mxu0 0.0
    %856 = vmatpush1.msra.mxu0 %v740
    %857 = vmatprep.subr.mxu0 0.0
    %858 = vmatpush1.msra.mxu0 %v741
    %859 = vmatprep.subr.mxu0 0.0
    %860 = vmatpush1.msra.mxu0 %v742
    %861 = vmatprep.subr.mxu0 0.0
    %862 = vmatpush1.msra.mxu0 %v743
    %863 = vmatprep.mubr.f32.mxu0 %v793
    %864 = vmatmul.mubr.f32.gmra.mrb[0].mxu0 %v785
    %v865 = vpop.f32.mrb[0].mxu0
    %v866 = vadd.f32 0.0, %v865
    %v867 = vpop.f32.mrb[0].mxu0
    %868 = vdwg.mxu0
    %869 = vmatprep.subr.mxu0 0.0
    %870 = vmatpush1.msra.mxu0 %v744
    %871 = vmatprep.subr.mxu0 0.0
    %872 = vmatpush1.msra.mxu0 %v745
    %873 = vmatprep.subr.mxu0 0.0
    %874 = vmatpush1.msra.mxu0 %v746
    %875 = vmatprep.subr.mxu0 0.0
    %876 = vmatpush1.msra.mxu0 %v747
    %877 = vmatprep.subr.mxu0 0.0
    %878 = vmatpush1.msra.mxu0 %v748
    %879 = vmatprep.subr.mxu0 0.0
    %880 = vmatpush1.msra.mxu0 %v749
    %881 = vmatprep.subr.mxu0 0.0
    %882 = vmatpush1.msra.mxu0 %v750
    %883 = vmatprep.subr.mxu0 0.0
    %884 = vmatpush1.msra.mxu0 %v751
    %885 = vmatprep.subr.mxu0 0.0
    %886 = vmatpush1.msra.mxu0 %v752
    %887 = vmatprep.subr.mxu0 0.0
    %888 = vmatpush1.msra.mxu0 %v753
    %889 = vmatprep.subr.mxu0 0.0
    %890 = vmatpush1.msra.mxu0 %v754
    %891 = vmatprep.subr.mxu0 0.0
    %892 = vmatpush1.msra.mxu0 %v755
    %893 = vmatprep.subr.mxu0 0.0
    %894 = vmatpush1.msra.mxu0 %v756
    %895 = vmatprep.subr.mxu0 0.0
    %896 = vmatpush1.msra.mxu0 %v757
    %897 = vmatprep.subr.mxu0 0.0
    %898 = vmatpush1.msra.mxu0 %v758
    %899 = vmatprep.subr.mxu0 0.0
    %900 = vmatpush1.msra.mxu0 %v759
    %901 = vmatprep.subr.mxu0 0.0
    %902 = vmatpush1.msra.mxu0 %v760
    %903 = vmatprep.subr.mxu0 0.0
    %904 = vmatpush1.msra.mxu0 %v761
    %905 = vmatprep.subr.mxu0 0.0
    %906 = vmatpush1.msra.mxu0 %v762
    %907 = vmatprep.subr.mxu0 0.0
    %908 = vmatpush1.msra.mxu0 %v763
    %909 = vmatprep.subr.mxu0 0.0
    %910 = vmatpush1.msra.mxu0 %v764
    %911 = vmatprep.subr.mxu0 0.0
    %912 = vmatpush1.msra.mxu0 %v765
    %913 = vmatprep.subr.mxu0 0.0
    %914 = vmatpush1.msra.mxu0 %v766
    %915 = vmatprep.subr.mxu0 0.0
    %916 = vmatpush1.msra.mxu0 %v767
    %917 = vmatprep.subr.mxu0 0.0
    %918 = vmatpush1.msra.mxu0 %v768
    %919 = vmatprep.subr.mxu0 0.0
    %920 = vmatpush1.msra.mxu0 %v769
    %921 = vmatprep.subr.mxu0 0.0
    %922 = vmatpush1.msra.mxu0 %v770
    %923 = vmatprep.subr.mxu0 0.0
    %924 = vmatpush1.msra.mxu0 %v771
    %925 = vmatprep.subr.mxu0 0.0
    %926 = vmatpush1.msra.mxu0 %v772
    %927 = vmatprep.subr.mxu0 0.0
    %928 = vmatpush1.msra.mxu0 %v773
    %929 = vmatprep.subr.mxu0 0.0
    %930 = vmatpush1.msra.mxu0 %v774
    %931 = vmatprep.subr.mxu0 0.0
    %932 = vmatpush1.msra.mxu0 %v775
    %933 = vmatprep.mubr.f32.mxu0 %v794
    %934 = vmatmul.mubr.f32.gmra.mrb[0].mxu0 %v792
    %v935 = vpop.f32.mrb[0].mxu0
    %v936 = vadd.f32 %v866, %v935
    %v937 = vpop.f32.mrb[0].mxu0
    %938 = vdwg.mxu0
    %v939 = vld [vmem:[%s5] sm:$0xff]
    %v940 = vld [vmem:[%s5 + $0x8] sm:$0xff]
    %v941 = vld [vmem:[%s5 + $0x10] sm:$0xff]
    %v942 = vld [vmem:[%s5 + $0x18] sm:$0xff]
    %v943 = vld [vmem:[%s5 + $0x20] sm:$0xff]
    %v944 = vld [vmem:[%s5 + $0x28] sm:$0xff]
    %v945 = vld [vmem:[%s5 + $0x30] sm:$0xff]
    %v946 = vld [vmem:[%s5 + $0x38] sm:$0xff]
    %v947 = vld [vmem:[%s5 + $0x40] sm:$0xff]
    %v948 = vld [vmem:[%s5 + $0x48] sm:$0xff]
    %v949 = vld [vmem:[%s5 + $0x50] sm:$0xff]
    %v950 = vld [vmem:[%s5 + $0x58] sm:$0xff]
    %v951 = vld [vmem:[%s5 + $0x60] sm:$0xff]
    %v952 = vld [vmem:[%s5 + $0x68] sm:$0xff]
    %v953 = vld [vmem:[%s5 + $0x70] sm:$0xff]
    %v954 = vld [vmem:[%s5 + $0x78] sm:$0xff]
    %v955 = vld [vmem:[%s6] sm:$0x1]
    %v957 = vlaneseq
    %v958 = vshrl.u32 %v957, 7
    %v959 = vsub.s32 0, %v958
    %v960 = vrot.slane %v955, %v959
    %962 = vmatprep.subr.mxu0 0.0
    %963 = vmatpush1.msra.mxu0 %v939
    %964 = vmatprep.subr.mxu0 0.0
    %965 = vmatpush1.msra.mxu0 %v940
    %966 = vmatprep.subr.mxu0 0.0
    %967 = vmatpush1.msra.mxu0 %v941
    %968 = vmatprep.subr.mxu0 0.0
    %969 = vmatpush1.msra.mxu0 %v942
    %970 = vmatprep.subr.mxu0 0.0
    %971 = vmatpush1.msra.mxu0 %v943
    %972 = vmatprep.subr.mxu0 0.0
    %973 = vmatpush1.msra.mxu0 %v944
    %974 = vmatprep.subr.mxu0 0.0
    %975 = vmatpush1.msra.mxu0 %v945
    %976 = vmatprep.subr.mxu0 0.0
    %977 = vmatpush1.msra.mxu0 %v946
    %978 = vmatprep.subr.mxu0 0.0
    %979 = vmatpush1.msra.mxu0 %v947
    %980 = vmatprep.subr.mxu0 0.0
    %981 = vmatpush1.msra.mxu0 %v948
    %982 = vmatprep.subr.mxu0 0.0
    %983 = vmatpush1.msra.mxu0 %v949
    %984 = vmatprep.subr.mxu0 0.0
    %985 = vmatpush1.msra.mxu0 %v950
    %986 = vmatprep.subr.mxu0 0.0
    %987 = vmatpush1.msra.mxu0 %v951
    %988 = vmatprep.subr.mxu0 0.0
    %989 = vmatpush1.msra.mxu0 %v952
    %990 = vmatprep.subr.mxu0 0.0
    %991 = vmatpush1.msra.mxu0 %v953
    %992 = vmatprep.subr.mxu0 0.0
    %993 = vmatpush1.msra.mxu0 %v954
    %994 = vmatprep.subr.mxu0 0.0
    %995 = vmatpush1.msra.mxu0 0.0
    %996 = vmatprep.subr.mxu0 0.0
    %997 = vmatpush1.msra.mxu0 0.0
    %998 = vmatprep.subr.mxu0 0.0
    %999 = vmatpush1.msra.mxu0 0.0
    %1000 = vmatprep.subr.mxu0 0.0
    %1001 = vmatpush1.msra.mxu0 0.0
    %1002 = vmatprep.subr.mxu0 0.0
    %1003 = vmatpush1.msra.mxu0 0.0
    %1004 = vmatprep.subr.mxu0 0.0
    %1005 = vmatpush1.msra.mxu0 0.0
    %1006 = vmatprep.subr.mxu0 0.0
    %1007 = vmatpush1.msra.mxu0 0.0
    %1008 = vmatprep.subr.mxu0 0.0
    %1009 = vmatpush1.msra.mxu0 0.0
    %1010 = vmatprep.subr.mxu0 0.0
    %1011 = vmatpush1.msra.mxu0 0.0
    %1012 = vmatprep.subr.mxu0 0.0
    %1013 = vmatpush1.msra.mxu0 0.0
    %1014 = vmatprep.subr.mxu0 0.0
    %1015 = vmatpush1.msra.mxu0 0.0
    %1016 = vmatprep.subr.mxu0 0.0
    %1017 = vmatpush1.msra.mxu0 0.0
    %1018 = vmatprep.subr.mxu0 0.0
    %1019 = vmatpush1.msra.mxu0 0.0
    %1020 = vmatprep.subr.mxu0 0.0
    %1021 = vmatpush1.msra.mxu0 0.0
    %1022 = vmatprep.subr.mxu0 0.0
    %1023 = vmatpush1.msra.mxu0 0.0
    %1024 = vmatprep.subr.mxu0 0.0
    %1025 = vmatpush1.msra.mxu0 0.0
    %1026 = vmatprep.mubr.f32.mxu0 0.0
    %1027 = vmatmul.mubr.f32.gmra.mrb[0].mxu0 %v936
    %v1028 = vpop.f32.mrb[0].mxu0
    %v1029 = vadd.f32 %v960, %v1028
    %v1030 = vpop.f32.mrb[0].mxu0
    %1031 = vdwg.mxu0
    %vm1032 = vcmask 9224
    %v1033 = vsel %vm1032, %v1029, -inf
    %1034 = vmax.xlane.f32.xlu0 %v1033
    %v1035 = vpop.xlane.xlu0 %1034
    %v1036 = vrot.slane %v1035, 4
    %v1037 = vmax.f32 %v1035, %v1036
    %v1038 = vrot.slane %v1037, 2
    %v1039 = vmax.f32 %v1037, %v1038
    %v1040 = vrot.slane %v1039, 1
    %v1041 = vmax.f32 %v1039, %v1040
    %s1042 = vtos %v1041
    %v1043 = vstv %s1042
    %v1044 = vsel %vm1032, %v1029, inf
    %1045 = vmin.xlane.f32.xlu0 %v1044
    %v1046 = vpop.xlane.xlu0 %1045
    %v1047 = vrot.slane %v1046, 4
    %v1048 = vmin.f32 %v1046, %v1047
    %v1049 = vrot.slane %v1048, 2
    %v1050 = vmin.f32 %v1048, %v1049
    %v1051 = vrot.slane %v1050, 1
    %v1052 = vmin.f32 %v1050, %v1051
    %s1053 = vtos %v1052
    %v1054 = vstv %s1053
    %v1055 = vsub.f32 %v1043, %v1054
    %vm1056 = vcmp.eq.f32.partialorder %v1055, 0.0
    %v1057 = vsel %vm1056, 1.0, %v1055
    %v1058 = vsub.f32 %v1029, %v1054
    %v1059 = vrcp.pop %v1057
    %v1060 = vmul.f32 %v1058, %v1059
    %v1061 = vld [vmem:[%s2] sm:$0x3]
    %v1062 = vld [vmem:[%s7] sm:$0xff]
    %v1063 = vld [vmem:[%s7 + $0x8] sm:$0xff]
    %v1064 = vld [vmem:[%s8] sm:$0x3]
    %1066 = vset.pattern.permute.xlu0 1
    %1067 = vperm.xlu0 %1066, %v1060
    %v1068 = vpop.permute.xlu0 %1067
    %v1071 = vlaneseq
    %v1072 = vshrl.u32 %v1071, 7
    %v1073 = vsub.s32 0, %v1072
    %v1074 = vrot.slane %v1064, %v1073
    %v1075 = vlaneseq
    %v1076 = vshrl.u32 %v1075, 7
    %v1077 = vsub.s32 1, %v1076
    %v1078 = vrot.slane %v1064, %v1077
    %v1081 = vmul.f32 %v1068, %v1074
    %v1082 = vmul.f32 %v1068, %v1078
    %vm1083 = vcmask 64512
    %v1085 = vsel %vm1083, %v1061, 0
    %1087 = vmatprep.subr.mxu0 %v1063
    %1088 = vmatpush1.msra.mxu0 %v1062
    %1089 = vmatprep.subr.mxu0 0.0
    %1090 = vmatpush1.msra.mxu0 0.0
    %1091 = vmatprep.subr.mxu0 0.0
    %1092 = vmatpush1.msra.mxu0 0.0
    %1093 = vmatprep.subr.mxu0 0.0
    %1094 = vmatpush1.msra.mxu0 0.0
    %1095 = vmatprep.subr.mxu0 0.0
    %1096 = vmatpush1.msra.mxu0 0.0
    %1097 = vmatprep.subr.mxu0 0.0
    %1098 = vmatpush1.msra.mxu0 0.0
    %1099 = vmatprep.subr.mxu0 0.0
    %1100 = vmatpush1.msra.mxu0 0.0
    %1101 = vmatprep.subr.mxu0 0.0
    %1102 = vmatpush1.msra.mxu0 0.0
    %1103 = vmatprep.subr.mxu0 0.0
    %1104 = vmatpush1.msra.mxu0 0.0
    %1105 = vmatprep.subr.mxu0 0.0
    %1106 = vmatpush1.msra.mxu0 0.0
    %1107 = vmatprep.subr.mxu0 0.0
    %1108 = vmatpush1.msra.mxu0 0.0
    %1109 = vmatprep.subr.mxu0 0.0
    %1110 = vmatpush1.msra.mxu0 0.0
    %1111 = vmatprep.subr.mxu0 0.0
    %1112 = vmatpush1.msra.mxu0 0.0
    %1113 = vmatprep.subr.mxu0 0.0
    %1114 = vmatpush1.msra.mxu0 0.0
    %1115 = vmatprep.subr.mxu0 0.0
    %1116 = vmatpush1.msra.mxu0 0.0
    %1117 = vmatprep.subr.mxu0 0.0
    %1118 = vmatpush1.msra.mxu0 0.0
    %1119 = vmatprep.subr.mxu0 0.0
    %1120 = vmatpush1.msra.mxu0 0.0
    %1121 = vmatprep.subr.mxu0 0.0
    %1122 = vmatpush1.msra.mxu0 0.0
    %1123 = vmatprep.subr.mxu0 0.0
    %1124 = vmatpush1.msra.mxu0 0.0
    %1125 = vmatprep.subr.mxu0 0.0
    %1126 = vmatpush1.msra.mxu0 0.0
    %1127 = vmatprep.subr.mxu0 0.0
    %1128 = vmatpush1.msra.mxu0 0.0
    %1129 = vmatprep.subr.mxu0 0.0
    %1130 = vmatpush1.msra.mxu0 0.0
    %1131 = vmatprep.subr.mxu0 0.0
    %1132 = vmatpush1.msra.mxu0 0.0
    %1133 = vmatprep.subr.mxu0 0.0
    %1134 = vmatpush1.msra.mxu0 0.0
    %1135 = vmatprep.subr.mxu0 0.0
    %1136 = vmatpush1.msra.mxu0 0.0
    %1137 = vmatprep.subr.mxu0 0.0
    %1138 = vmatpush1.msra.mxu0 0.0
    %1139 = vmatprep.subr.mxu0 0.0
    %1140 = vmatpush1.msra.mxu0 0.0
    %1141 = vmatprep.subr.mxu0 0.0
    %1142 = vmatpush1.msra.mxu0 0.0
    %1143 = vmatprep.subr.mxu0 0.0
    %1144 = vmatpush1.msra.mxu0 0.0
    %1145 = vmatprep.subr.mxu0 0.0
    %1146 = vmatpush1.msra.mxu0 0.0
    %1147 = vmatprep.subr.mxu0 0.0
    %1148 = vmatpush1.msra.mxu0 0.0
    %1149 = vmatprep.subr.mxu0 0.0
    %1150 = vmatpush1.msra.mxu0 0.0
    %1151 = vmatprep.mubr.f32.mxu0 0.0
    %1152 = vmatmul.mubr.f32.gmra.mrb[0].mxu0 %v1085
    %v1153 = vpop.f32.mrb[0].mxu0
    %v1154 = vadd.f32 %v1081, %v1153
    %v1155 = vpop.f32.mrb[0].mxu0
    %v1156 = vadd.f32 %v1082, %v1155
    %1157 = vdwg.mxu0
    %v1158 = vld [vmem:[%s9] sm:$0x3]
    %v1160 = vlaneseq
    %v1161 = vshrl.u32 %v1160, 7
    %v1162 = vsub.s32 0, %v1161
    %v1163 = vrot.slane %v1158, %v1162
    %v1164 = vlaneseq
    %v1165 = vshrl.u32 %v1164, 7
    %v1166 = vsub.s32 1, %v1165
    %v1167 = vrot.slane %v1158, %v1166
    %v1170 = vadd.f32 %v1154, %v1163
    %v1171 = vadd.f32 %v1156, %v1167
    %v1172 = vmax.f32 %v1170, 0.0
    %v1173 = vmax.f32 %v1171, 0.0
    %v1174 = vld [vmem:[%s10] sm:$0xff]
    %v1175 = vld [vmem:[%s10 + $0x8] sm:$0xff]
    %v1176 = vld [vmem:[%s10 + $0x10] sm:$0xff]
    %v1177 = vld [vmem:[%s10 + $0x18] sm:$0xff]
    %v1178 = vld [vmem:[%s10 + $0x20] sm:$0xff]
    %v1179 = vld [vmem:[%s10 + $0x28] sm:$0xff]
    %v1180 = vld [vmem:[%s10 + $0x30] sm:$0xff]
    %v1181 = vld [vmem:[%s10 + $0x38] sm:$0xff]
    %v1182 = vld [vmem:[%s10 + $0x40] sm:$0xff]
    %v1183 = vld [vmem:[%s10 + $0x48] sm:$0xff]
    %v1184 = vld [vmem:[%s10 + $0x50] sm:$0xff]
    %v1185 = vld [vmem:[%s10 + $0x58] sm:$0xff]
    %v1186 = vld [vmem:[%s10 + $0x60] sm:$0xff]
    %v1187 = vld [vmem:[%s10 + $0x68] sm:$0xff]
    %v1188 = vld [vmem:[%s10 + $0x70] sm:$0xff]
    %v1189 = vld [vmem:[%s10 + $0x78] sm:$0xff]
    %v1190 = vld [vmem:[%s10 + $0x80] sm:$0xff]
    %v1191 = vld [vmem:[%s10 + $0x88] sm:$0xff]
    %v1192 = vld [vmem:[%s10 + $0x90] sm:$0xff]
    %v1193 = vld [vmem:[%s10 + $0x98] sm:$0xff]
    %v1194 = vld [vmem:[%s10 + $0xa0] sm:$0xff]
    %v1195 = vld [vmem:[%s10 + $0xa8] sm:$0xff]
    %v1196 = vld [vmem:[%s10 + $0xb0] sm:$0xff]
    %v1197 = vld [vmem:[%s10 + $0xb8] sm:$0xff]
    %v1198 = vld [vmem:[%s10 + $0xc0] sm:$0xff]
    %v1199 = vld [vmem:[%s10 + $0xc8] sm:$0xff]
    %v1200 = vld [vmem:[%s10 + $0xd0] sm:$0xff]
    %v1201 = vld [vmem:[%s10 + $0xd8] sm:$0xff]
    %v1202 = vld [vmem:[%s10 + $0xe0] sm:$0xff]
    %v1203 = vld [vmem:[%s10 + $0xe8] sm:$0xff]
    %v1204 = vld [vmem:[%s10 + $0xf0] sm:$0xff]
    %v1205 = vld [vmem:[%s10 + $0xf8] sm:$0xff]
    %v1206 = vld [vmem:[%s10 + $0x100] sm:$0xff]
    %v1207 = vld [vmem:[%s10 + $0x108] sm:$0xff]
    %v1208 = vld [vmem:[%s10 + $0x110] sm:$0xff]
    %v1209 = vld [vmem:[%s10 + $0x118] sm:$0xff]
    %v1210 = vld [vmem:[%s10 + $0x120] sm:$0xff]
    %v1211 = vld [vmem:[%s10 + $0x128] sm:$0xff]
    %v1212 = vld [vmem:[%s10 + $0x130] sm:$0xff]
    %v1213 = vld [vmem:[%s10 + $0x138] sm:$0xff]
    %v1214 = vld [vmem:[%s10 + $0x140] sm:$0xff]
    %v1215 = vld [vmem:[%s10 + $0x148] sm:$0xff]
    %v1216 = vld [vmem:[%s10 + $0x150] sm:$0xff]
    %v1217 = vld [vmem:[%s10 + $0x158] sm:$0xff]
    %v1218 = vld [vmem:[%s10 + $0x160] sm:$0xff]
    %v1219 = vld [vmem:[%s10 + $0x168] sm:$0xff]
    %v1220 = vld [vmem:[%s10 + $0x170] sm:$0xff]
    %v1221 = vld [vmem:[%s10 + $0x178] sm:$0xff]
    %v1222 = vld [vmem:[%s10 + $0x180] sm:$0xff]
    %v1223 = vld [vmem:[%s10 + $0x188] sm:$0xff]
    %v1224 = vld [vmem:[%s10 + $0x190] sm:$0xff]
    %v1225 = vld [vmem:[%s10 + $0x198] sm:$0xff]
    %v1226 = vld [vmem:[%s10 + $0x1a0] sm:$0xff]
    %v1227 = vld [vmem:[%s10 + $0x1a8] sm:$0xff]
    %v1228 = vld [vmem:[%s10 + $0x1b0] sm:$0xff]
    %v1229 = vld [vmem:[%s10 + $0x1b8] sm:$0xff]
    %v1230 = vld [vmem:[%s10 + $0x1c0] sm:$0xff]
    %v1231 = vld [vmem:[%s10 + $0x1c8] sm:$0xff]
    %v1232 = vld [vmem:[%s10 + $0x1d0] sm:$0xff]
    %v1233 = vld [vmem:[%s10 + $0x1d8] sm:$0xff]
    %v1234 = vld [vmem:[%s10 + $0x1e0] sm:$0xff]
    %v1235 = vld [vmem:[%s10 + $0x1e8] sm:$0xff]
    %v1236 = vld [vmem:[%s10 + $0x1f0] sm:$0xff]
    %v1237 = vld [vmem:[%s10 + $0x1f8] sm:$0xff]
    %v1238 = vld [vmem:[%s11] sm:$0x3]
    %v1240 = vlaneseq
    %v1241 = vshrl.u32 %v1240, 7
    %v1242 = vsub.s32 0, %v1241
    %v1243 = vrot.slane %v1238, %v1242
    %v1244 = vlaneseq
    %v1245 = vshrl.u32 %v1244, 7
    %v1246 = vsub.s32 1, %v1245
    %v1247 = vrot.slane %v1238, %v1246
    %1250 = vmatprep.subr.mxu0 %v1175
    %1251 = vmatpush1.msra.mxu0 %v1174
    %1252 = vmatprep.subr.mxu0 %v1177
    %1253 = vmatpush1.msra.mxu0 %v1176
    %1254 = vmatprep.subr.mxu0 %v1179
    %1255 = vmatpush1.msra.mxu0 %v1178
    %1256 = vmatprep.subr.mxu0 %v1181
    %1257 = vmatpush1.msra.mxu0 %v1180
    %1258 = vmatprep.subr.mxu0 %v1183
    %1259 = vmatpush1.msra.mxu0 %v1182
    %1260 = vmatprep.subr.mxu0 %v1185
    %1261 = vmatpush1.msra.mxu0 %v1184
    %1262 = vmatprep.subr.mxu0 %v1187
    %1263 = vmatpush1.msra.mxu0 %v1186
    %1264 = vmatprep.subr.mxu0 %v1189
    %1265 = vmatpush1.msra.mxu0 %v1188
    %1266 = vmatprep.subr.mxu0 %v1191
    %1267 = vmatpush1.msra.mxu0 %v1190
    %1268 = vmatprep.subr.mxu0 %v1193
    %1269 = vmatpush1.msra.mxu0 %v1192
    %1270 = vmatprep.subr.mxu0 %v1195
    %1271 = vmatpush1.msra.mxu0 %v1194
    %1272 = vmatprep.subr.mxu0 %v1197
    %1273 = vmatpush1.msra.mxu0 %v1196
    %1274 = vmatprep.subr.mxu0 %v1199
    %1275 = vmatpush1.msra.mxu0 %v1198
    %1276 = vmatprep.subr.mxu0 %v1201
    %1277 = vmatpush1.msra.mxu0 %v1200
    %1278 = vmatprep.subr.mxu0 %v1203
    %1279 = vmatpush1.msra.mxu0 %v1202
    %1280 = vmatprep.subr.mxu0 %v1205
    %1281 = vmatpush1.msra.mxu0 %v1204
    %1282 = vmatprep.subr.mxu0 %v1207
    %1283 = vmatpush1.msra.mxu0 %v1206
    %1284 = vmatprep.subr.mxu0 %v1209
    %1285 = vmatpush1.msra.mxu0 %v1208
    %1286 = vmatprep.subr.mxu0 %v1211
    %1287 = vmatpush1.msra.mxu0 %v1210
    %1288 = vmatprep.subr.mxu0 %v1213
    %1289 = vmatpush1.msra.mxu0 %v1212
    %1290 = vmatprep.subr.mxu0 %v1215
    %1291 = vmatpush1.msra.mxu0 %v1214
    %1292 = vmatprep.subr.mxu0 %v1217
    %1293 = vmatpush1.msra.mxu0 %v1216
    %1294 = vmatprep.subr.mxu0 %v1219
    %1295 = vmatpush1.msra.mxu0 %v1218
    %1296 = vmatprep.subr.mxu0 %v1221
    %1297 = vmatpush1.msra.mxu0 %v1220
    %1298 = vmatprep.subr.mxu0 %v1223
    %1299 = vmatpush1.msra.mxu0 %v1222
    %1300 = vmatprep.subr.mxu0 %v1225
    %1301 = vmatpush1.msra.mxu0 %v1224
    %1302 = vmatprep.subr.mxu0 %v1227
    %1303 = vmatpush1.msra.mxu0 %v1226
    %1304 = vmatprep.subr.mxu0 %v1229
    %1305 = vmatpush1.msra.mxu0 %v1228
    %1306 = vmatprep.subr.mxu0 %v1231
    %1307 = vmatpush1.msra.mxu0 %v1230
    %1308 = vmatprep.subr.mxu0 %v1233
    %1309 = vmatpush1.msra.mxu0 %v1232
    %1310 = vmatprep.subr.mxu0 %v1235
    %1311 = vmatpush1.msra.mxu0 %v1234
    %1312 = vmatprep.subr.mxu0 %v1237
    %1313 = vmatpush1.msra.mxu0 %v1236
    %1314 = vmatprep.mubr.f32.mxu0 %v1173
    %1315 = vmatmul.mubr.f32.gmra.mrb[0].mxu0 %v1172
    %v1316 = vpop.f32.mrb[0].mxu0
    %v1317 = vadd.f32 %v1243, %v1316
    %v1318 = vpop.f32.mrb[0].mxu0
    %v1319 = vadd.f32 %v1247, %v1318
    %1320 = vdwg.mxu0
    %v1321 = vmax.f32 %v1317, 0.0
    %v1322 = vmax.f32 %v1319, 0.0
    %v1323 = vld [vmem:[%s12] sm:$0xff]
    %v1324 = vld [vmem:[%s12 + $0x8] sm:$0xff]
    %v1325 = vld [vmem:[%s12 + $0x10] sm:$0xff]
    %v1326 = vld [vmem:[%s12 + $0x18] sm:$0xff]
    %v1327 = vld [vmem:[%s12 + $0x20] sm:$0xff]
    %v1328 = vld [vmem:[%s12 + $0x28] sm:$0xff]
    %v1329 = vld [vmem:[%s12 + $0x30] sm:$0xff]
    %v1330 = vld [vmem:[%s12 + $0x38] sm:$0xff]
    %v1331 = vld [vmem:[%s12 + $0x40] sm:$0xff]
    %v1332 = vld [vmem:[%s12 + $0x48] sm:$0xff]
    %v1333 = vld [vmem:[%s12 + $0x50] sm:$0xff]
    %v1334 = vld [vmem:[%s12 + $0x58] sm:$0xff]
    %v1335 = vld [vmem:[%s12 + $0x60] sm:$0xff]
    %v1336 = vld [vmem:[%s12 + $0x68] sm:$0xff]
    %v1337 = vld [vmem:[%s12 + $0x70] sm:$0xff]
    %v1338 = vld [vmem:[%s12 + $0x78] sm:$0xff]
    %v1339 = vld [vmem:[%s12 + $0x80] sm:$0xff]
    %v1340 = vld [vmem:[%s12 + $0x88] sm:$0xff]
    %v1341 = vld [vmem:[%s12 + $0x90] sm:$0xff]
    %v1342 = vld [vmem:[%s12 + $0x98] sm:$0xff]
    %v1343 = vld [vmem:[%s12 + $0xa0] sm:$0xff]
    %v1344 = vld [vmem:[%s12 + $0xa8] sm:$0xff]
    %v1345 = vld [vmem:[%s12 + $0xb0] sm:$0xff]
    %v1346 = vld [vmem:[%s12 + $0xb8] sm:$0xff]
    %v1347 = vld [vmem:[%s12 + $0xc0] sm:$0xff]
    %v1348 = vld [vmem:[%s12 + $0xc8] sm:$0xff]
    %v1349 = vld [vmem:[%s12 + $0xd0] sm:$0xff]
    %v1350 = vld [vmem:[%s12 + $0xd8] sm:$0xff]
    %v1351 = vld [vmem:[%s12 + $0xe0] sm:$0xff]
    %v1352 = vld [vmem:[%s12 + $0xe8] sm:$0xff]
    %v1353 = vld [vmem:[%s12 + $0xf0] sm:$0xff]
    %v1354 = vld [vmem:[%s12 + $0xf8] sm:$0xff]
    %v1355 = vld [vmem:[%s12 + $0x100] sm:$0xff]
    %v1356 = vld [vmem:[%s12 + $0x108] sm:$0xff]
    %v1357 = vld [vmem:[%s12 + $0x110] sm:$0xff]
    %v1358 = vld [vmem:[%s12 + $0x118] sm:$0xff]
    %v1359 = vld [vmem:[%s12 + $0x120] sm:$0xff]
    %v1360 = vld [vmem:[%s12 + $0x128] sm:$0xff]
    %v1361 = vld [vmem:[%s12 + $0x130] sm:$0xff]
    %v1362 = vld [vmem:[%s12 + $0x138] sm:$0xff]
    %v1363 = vld [vmem:[%s12 + $0x140] sm:$0xff]
    %v1364 = vld [vmem:[%s12 + $0x148] sm:$0xff]
    %v1365 = vld [vmem:[%s12 + $0x150] sm:$0xff]
    %v1366 = vld [vmem:[%s12 + $0x158] sm:$0xff]
    %v1367 = vld [vmem:[%s12 + $0x160] sm:$0xff]
    %v1368 = vld [vmem:[%s12 + $0x168] sm:$0xff]
    %v1369 = vld [vmem:[%s12 + $0x170] sm:$0xff]
    %v1370 = vld [vmem:[%s12 + $0x178] sm:$0xff]
    %v1371 = vld [vmem:[%s12 + $0x180] sm:$0xff]
    %v1372 = vld [vmem:[%s12 + $0x188] sm:$0xff]
    %v1373 = vld [vmem:[%s12 + $0x190] sm:$0xff]
    %v1374 = vld [vmem:[%s12 + $0x198] sm:$0xff]
    %v1375 = vld [vmem:[%s12 + $0x1a0] sm:$0xff]
    %v1376 = vld [vmem:[%s12 + $0x1a8] sm:$0xff]
    %v1377 = vld [vmem:[%s12 + $0x1b0] sm:$0xff]
    %v1378 = vld [vmem:[%s12 + $0x1b8] sm:$0xff]
    %v1379 = vld [vmem:[%s12 + $0x1c0] sm:$0xff]
    %v1380 = vld [vmem:[%s12 + $0x1c8] sm:$0xff]
    %v1381 = vld [vmem:[%s12 + $0x1d0] sm:$0xff]
    %v1382 = vld [vmem:[%s12 + $0x1d8] sm:$0xff]
    %v1383 = vld [vmem:[%s12 + $0x1e0] sm:$0xff]
    %v1384 = vld [vmem:[%s12 + $0x1e8] sm:$0xff]
    %v1385 = vld [vmem:[%s12 + $0x1f0] sm:$0xff]
    %v1386 = vld [vmem:[%s12 + $0x1f8] sm:$0xff]
    %v1387 = vld [vmem:[%s13] sm:$0x3]
    %v1389 = vlaneseq
    %v1390 = vshrl.u32 %v1389, 7
    %v1391 = vsub.s32 0, %v1390
    %v1392 = vrot.slane %v1387, %v1391
    %v1393 = vlaneseq
    %v1394 = vshrl.u32 %v1393, 7
    %v1395 = vsub.s32 1, %v1394
    %v1396 = vrot.slane %v1387, %v1395
    %1399 = vmatprep.subr.mxu0 %v1324
    %1400 = vmatpush1.msra.mxu0 %v1323
    %1401 = vmatprep.subr.mxu0 %v1326
    %1402 = vmatpush1.msra.mxu0 %v1325
    %1403 = vmatprep.subr.mxu0 %v1328
    %1404 = vmatpush1.msra.mxu0 %v1327
    %1405 = vmatprep.subr.mxu0 %v1330
    %1406 = vmatpush1.msra.mxu0 %v1329
    %1407 = vmatprep.subr.mxu0 %v1332
    %1408 = vmatpush1.msra.mxu0 %v1331
    %1409 = vmatprep.subr.mxu0 %v1334
    %1410 = vmatpush1.msra.mxu0 %v1333
    %1411 = vmatprep.subr.mxu0 %v1336
    %1412 = vmatpush1.msra.mxu0 %v1335
    %1413 = vmatprep.subr.mxu0 %v1338
    %1414 = vmatpush1.msra.mxu0 %v1337
    %1415 = vmatprep.subr.mxu0 %v1340
    %1416 = vmatpush1.msra.mxu0 %v1339
    %1417 = vmatprep.subr.mxu0 %v1342
    %1418 = vmatpush1.msra.mxu0 %v1341
    %1419 = vmatprep.subr.mxu0 %v1344
    %1420 = vmatpush1.msra.mxu0 %v1343
    %1421 = vmatprep.subr.mxu0 %v1346
    %1422 = vmatpush1.msra.mxu0 %v1345
    %1423 = vmatprep.subr.mxu0 %v1348
    %1424 = vmatpush1.msra.mxu0 %v1347
    %1425 = vmatprep.subr.mxu0 %v1350
    %1426 = vmatpush1.msra.mxu0 %v1349
    %1427 = vmatprep.subr.mxu0 %v1352
    %1428 = vmatpush1.msra.mxu0 %v1351
    %1429 = vmatprep.subr.mxu0 %v1354
    %1430 = vmatpush1.msra.mxu0 %v1353
    %1431 = vmatprep.subr.mxu0 %v1356
    %1432 = vmatpush1.msra.mxu0 %v1355
    %1433 = vmatprep.subr.mxu0 %v1358
    %1434 = vmatpush1.msra.mxu0 %v1357
    %1435 = vmatprep.subr.mxu0 %v1360
    %1436 = vmatpush1.msra.mxu0 %v1359
    %1437 = vmatprep.subr.mxu0 %v1362
    %1438 = vmatpush1.msra.mxu0 %v1361
    %1439 = vmatprep.subr.mxu0 %v1364
    %1440 = vmatpush1.msra.mxu0 %v1363
    %1441 = vmatprep.subr.mxu0 %v1366
    %1442 = vmatpush1.msra.mxu0 %v1365
    %1443 = vmatprep.subr.mxu0 %v1368
    %1444 = vmatpush1.msra.mxu0 %v1367
    %1445 = vmatprep.subr.mxu0 %v1370
    %1446 = vmatpush1.msra.mxu0 %v1369
    %1447 = vmatprep.subr.mxu0 %v1372
    %1448 = vmatpush1.msra.mxu0 %v1371
    %1449 = vmatprep.subr.mxu0 %v1374
    %1450 = vmatpush1.msra.mxu0 %v1373
    %1451 = vmatprep.subr.mxu0 %v1376
    %1452 = vmatpush1.msra.mxu0 %v1375
    %1453 = vmatprep.subr.mxu0 %v1378
    %1454 = vmatpush1.msra.mxu0 %v1377
    %1455 = vmatprep.subr.mxu0 %v1380
    %1456 = vmatpush1.msra.mxu0 %v1379
    %1457 = vmatprep.subr.mxu0 %v1382
    %1458 = vmatpush1.msra.mxu0 %v1381
    %1459 = vmatprep.subr.mxu0 %v1384
    %1460 = vmatpush1.msra.mxu0 %v1383
    %1461 = vmatprep.subr.mxu0 %v1386
    %1462 = vmatpush1.msra.mxu0 %v1385
    %1463 = vmatprep.mubr.f32.mxu0 %v1322
    %1464 = vmatmul.mubr.f32.gmra.mrb[0].mxu0 %v1321
    %v1465 = vpop.f32.mrb[0].mxu0
    %v1466 = vadd.f32 %v1392, %v1465
    %v1467 = vpop.f32.mrb[0].mxu0
    %v1468 = vadd.f32 %v1396, %v1467
    %1469 = vdwg.mxu0
    %v1470 = vmax.f32 %v1466, 0.0
    %v1471 = vmax.f32 %v1468, 0.0
    %v1472 = vld [vmem:[%s14] sm:$0xff]
    %v1473 = vld [vmem:[%s14 + $0x8] sm:$0xff]
    %v1474 = vld [vmem:[%s14 + $0x10] sm:$0xff]
    %v1475 = vld [vmem:[%s14 + $0x18] sm:$0xff]
    %v1476 = vld [vmem:[%s14 + $0x20] sm:$0xff]
    %v1477 = vld [vmem:[%s14 + $0x28] sm:$0xff]
    %v1478 = vld [vmem:[%s14 + $0x30] sm:$0xff]
    %v1479 = vld [vmem:[%s14 + $0x38] sm:$0xff]
    %v1480 = vld [vmem:[%s14 + $0x40] sm:$0xff]
    %v1481 = vld [vmem:[%s14 + $0x48] sm:$0xff]
    %v1482 = vld [vmem:[%s14 + $0x50] sm:$0xff]
    %v1483 = vld [vmem:[%s14 + $0x58] sm:$0xff]
    %v1484 = vld [vmem:[%s14 + $0x60] sm:$0xff]
    %v1485 = vld [vmem:[%s14 + $0x68] sm:$0xff]
    %v1486 = vld [vmem:[%s14 + $0x70] sm:$0xff]
    %v1487 = vld [vmem:[%s14 + $0x78] sm:$0xff]
    %v1488 = vld [vmem:[%s14 + $0x80] sm:$0xff]
    %v1489 = vld [vmem:[%s14 + $0x88] sm:$0xff]
    %v1490 = vld [vmem:[%s14 + $0x90] sm:$0xff]
    %v1491 = vld [vmem:[%s14 + $0x98] sm:$0xff]
    %v1492 = vld [vmem:[%s14 + $0xa0] sm:$0xff]
    %v1493 = vld [vmem:[%s14 + $0xa8] sm:$0xff]
    %v1494 = vld [vmem:[%s14 + $0xb0] sm:$0xff]
    %v1495 = vld [vmem:[%s14 + $0xb8] sm:$0xff]
    %v1496 = vld [vmem:[%s14 + $0xc0] sm:$0xff]
    %v1497 = vld [vmem:[%s14 + $0xc8] sm:$0xff]
    %v1498 = vld [vmem:[%s14 + $0xd0] sm:$0xff]
    %v1499 = vld [vmem:[%s14 + $0xd8] sm:$0xff]
    %v1500 = vld [vmem:[%s14 + $0xe0] sm:$0xff]
    %v1501 = vld [vmem:[%s14 + $0xe8] sm:$0xff]
    %v1502 = vld [vmem:[%s14 + $0xf0] sm:$0xff]
    %v1503 = vld [vmem:[%s14 + $0xf8] sm:$0xff]
    %v1504 = vld [vmem:[%s15] sm:$0x1]
    %v1506 = vlaneseq
    %v1507 = vshrl.u32 %v1506, 7
    %v1508 = vsub.s32 0, %v1507
    %v1509 = vrot.slane %v1504, %v1508
    %1511 = vmatprep.subr.mxu0 0.0
    %1512 = vmatpush1.msra.mxu0 %v1472
    %1513 = vmatprep.subr.mxu0 0.0
    %1514 = vmatpush1.msra.mxu0 %v1473
    %1515 = vmatprep.subr.mxu0 0.0
    %1516 = vmatpush1.msra.mxu0 %v1474
    %1517 = vmatprep.subr.mxu0 0.0
    %1518 = vmatpush1.msra.mxu0 %v1475
    %1519 = vmatprep.subr.mxu0 0.0
    %1520 = vmatpush1.msra.mxu0 %v1476
    %1521 = vmatprep.subr.mxu0 0.0
    %1522 = vmatpush1.msra.mxu0 %v1477
    %1523 = vmatprep.subr.mxu0 0.0
    %1524 = vmatpush1.msra.mxu0 %v1478
    %1525 = vmatprep.subr.mxu0 0.0
    %1526 = vmatpush1.msra.mxu0 %v1479
    %1527 = vmatprep.subr.mxu0 0.0
    %1528 = vmatpush1.msra.mxu0 %v1480
    %1529 = vmatprep.subr.mxu0 0.0
    %1530 = vmatpush1.msra.mxu0 %v1481
    %1531 = vmatprep.subr.mxu0 0.0
    %1532 = vmatpush1.msra.mxu0 %v1482
    %1533 = vmatprep.subr.mxu0 0.0
    %1534 = vmatpush1.msra.mxu0 %v1483
    %1535 = vmatprep.subr.mxu0 0.0
    %1536 = vmatpush1.msra.mxu0 %v1484
    %1537 = vmatprep.subr.mxu0 0.0
    %1538 = vmatpush1.msra.mxu0 %v1485
    %1539 = vmatprep.subr.mxu0 0.0
    %1540 = vmatpush1.msra.mxu0 %v1486
    %1541 = vmatprep.subr.mxu0 0.0
    %1542 = vmatpush1.msra.mxu0 %v1487
    %1543 = vmatprep.subr.mxu0 0.0
    %1544 = vmatpush1.msra.mxu0 %v1488
    %1545 = vmatprep.subr.mxu0 0.0
    %1546 = vmatpush1.msra.mxu0 %v1489
    %1547 = vmatprep.subr.mxu0 0.0
    %1548 = vmatpush1.msra.mxu0 %v1490
    %1549 = vmatprep.subr.mxu0 0.0
    %1550 = vmatpush1.msra.mxu0 %v1491
    %1551 = vmatprep.subr.mxu0 0.0
    %1552 = vmatpush1.msra.mxu0 %v1492
    %1553 = vmatprep.subr.mxu0 0.0
    %1554 = vmatpush1.msra.mxu0 %v1493
    %1555 = vmatprep.subr.mxu0 0.0
    %1556 = vmatpush1.msra.mxu0 %v1494
    %1557 = vmatprep.subr.mxu0 0.0
    %1558 = vmatpush1.msra.mxu0 %v1495
    %1559 = vmatprep.subr.mxu0 0.0
    %1560 = vmatpush1.msra.mxu0 %v1496
    %1561 = vmatprep.subr.mxu0 0.0
    %1562 = vmatpush1.msra.mxu0 %v1497
    %1563 = vmatprep.subr.mxu0 0.0
    %1564 = vmatpush1.msra.mxu0 %v1498
    %1565 = vmatprep.subr.mxu0 0.0
    %1566 = vmatpush1.msra.mxu0 %v1499
    %1567 = vmatprep.subr.mxu0 0.0
    %1568 = vmatpush1.msra.mxu0 %v1500
    %1569 = vmatprep.subr.mxu0 0.0
    %1570 = vmatpush1.msra.mxu0 %v1501
    %1571 = vmatprep.subr.mxu0 0.0
    %1572 = vmatpush1.msra.mxu0 %v1502
    %1573 = vmatprep.subr.mxu0 0.0
    %1574 = vmatpush1.msra.mxu0 %v1503
    %1575 = vmatprep.mubr.f32.mxu0 %v1471
    %1576 = vmatmul.mubr.f32.gmra.mrb[0].mxu0 %v1470
    %v1577 = vpop.f32.mrb[0].mxu0
    %v1578 = vadd.f32 %v1509, %v1577
    %v1579 = vpop.f32.mrb[0].mxu0
    %1580 = vdwg.mxu0
    %1581 = vst [vmem:[#allocation2] sm:$0x3] %v1578
    // Predicated region
    $region66: #{mlp_cnn_forward.1} parent=1 // pred_check
      _
    $region67: #{mlp_cnn_forward.1} parent=1 // pred_check_branch
      %1583 = sbr.rel (0) target = $region69
    $region68: #{mlp_cnn_forward.1} parent=1 // pred_region
      %s1585 = ssub.s32 32, 32
      %1586 = vsyncadd [#allocation3], %s1585
      %s1588 = sshll.u32 [#allocation2], 4
      %s1589 = int_to_ptr.vmem [resolvable:$true] %s1588
      %1591 = dma.vmem_to_hbm [thread:$0]  %s1589, 32, %s16, [#allocation3]
    $region69: #{mlp_cnn_forward.1} parent=1 // pred_fallthru
      _
    // Predicated region
    $region70: #{mlp_cnn_forward.1} parent=1 // pred_check
      _
    $region71: #{mlp_cnn_forward.1} parent=1 // pred_check_branch
      %1593 = sbr.rel (0) target = $region73
    $region72: #{mlp_cnn_forward.1} parent=1 // pred_region
      %1594 = dma.done [#allocation3], 32
    $region73: #{mlp_cnn_forward.1} parent=1 // pred_fallthru
      _
    %1595 = vsyncpa [#allocation3], 1

</llo_original>
